<compile_context>
chip_gen: v7x
topology: tpu7x:2x2x1
jax: 0.10.0
libtpu: 0.0.40
codegen_flags: <defaults>
</compile_context>

<pallas_src>
import math

import jax
import jax.numpy as jnp
from jax import lax
from jax.experimental import pallas as pl
from jax.experimental.pallas import tpu as pltpu


def mha_attn_kernel(q_ref, k_ref, v_ref, wo_ref, bo_ref, out_ref, acc_ref):
    hg = pl.program_id(2)

    @pl.when(hg == 0)
    def _init():
        acc_ref[...] = jnp.zeros_like(acc_ref)

    q = q_ref[0]                  # (g, tq, d_k)   scale already folded in
    k = k_ref[0]                  # (g, S,  d_k)
    v = v_ref[0]                  # (g, S,  d_k)
    wo = wo_ref[hg]               # (g, d_k, D)    resident weights, dyn. head-group index
    g = q.shape[0]

    # Batched per-head scores, contracting on d_k directly (no k.T materialization).
    s = lax.dot_general(q, k, (((2,), (2,)), ((0,), (0,))),
                        preferred_element_type=jnp.float32)          # (g, tq, S)
    # Mask intentionally ignored: reference masked_fill is non in-place (no-op).
    s = s - jnp.max(s, axis=-1, keepdims=True)
    p = jnp.exp(s)
    p = p * pl.reciprocal(jnp.sum(p, axis=-1, keepdims=True), approx=False)
    # (dropout on p is identity in eval mode)

    o = lax.dot_general(p.astype(v.dtype), v, (((2,), (1,)), ((0,), (0,))),
                        preferred_element_type=jnp.float32)          # (g, tq, d_k)

    # Fused output projection: accumulate this head-group's contribution to (tq, D).
    acc = acc_ref[...]
    for gi in range(g):           # static unroll over the (small) head group
        acc = acc + jnp.dot(o[gi].astype(wo.dtype), wo[gi],
                            preferred_element_type=jnp.float32)
    acc_ref[...] = acc

    @pl.when(hg == pl.num_programs(2) - 1)
    def _finalize():
        out_ref[0] = (acc_ref[...] + bo_ref[...]).astype(out_ref.dtype)


def _pick_head_group(n_heads, d_k, target_width=128):
    """Heads per grid step so the grouped width g*d_k reaches ~target_width."""
    g = max(1, min(n_heads, target_width // max(d_k, 1)))
    while n_heads % g:
        g -= 1
    return max(g, 1)


def multihead_attention(que, ke, val, params, n_heads, mask=None, *,
                        compute_dtype=None, head_group=None):
    del mask  # non in-place masked_fill in the reference -> no effect
    B, S, D = que.shape
    assert D % n_heads == 0
    H = n_heads
    d_k = D // H
    scale = 1.0 / math.sqrt(d_k)

    # --- One-time projections as plain XLA GEMMs (hoisted out of the kernel
    # so K/V are not re-projected once per query tile); head-major layout. ---
    q = (que @ params["wq"] + params["bq"][0]) * scale
    k = ke @ params["wk"] + params["bk"][0]
    v = val @ params["wv"] + params["bv"][0]
    q_hm = q.reshape(B, S, H, d_k).transpose(0, 2, 1, 3)          # (B, H, S, d_k)
    k_hm = k.reshape(B, S, H, d_k).transpose(0, 2, 1, 3)
    v_hm = v.reshape(B, S, H, d_k).transpose(0, 2, 1, 3)

    g = head_group if head_group is not None else _pick_head_group(H, d_k)
    assert H % g == 0
    HG = H // g

    wo_hm = params["wo"].reshape(H, d_k, D).reshape(HG, g, d_k, D)  # resident
    bo = params["bo"]                                               # (1, D), f32

    if compute_dtype is not None:
        q_hm = q_hm.astype(compute_dtype)
        k_hm = k_hm.astype(compute_dtype)
        v_hm = v_hm.astype(compute_dtype)
        wo_hm = wo_hm.astype(compute_dtype)
    in_bytes = jnp.dtype(q_hm.dtype).itemsize

    # --- Generation-aware VMEM budget. ---
    try:
        phys_vmem = int(pltpu.get_tpu_info().vmem_capacity_bytes)
    except Exception:
        phys_vmem = 64 * 1024 * 1024        # conservative: fits every generation
    vmem_cap = int(0.85 * phys_vmem)

    def vmem_footprint(tq_):
        qkv = 2 * in_bytes * (g * tq_ * d_k + 2 * g * S * d_k)   # double-buffered blocks
        wo_res = 2 * in_bytes * (H * d_k * D) + 2 * 4 * D        # resident Wo + bo
        outb = 2 * 4 * (tq_ * D) + 4 * (tq_ * D)                 # out block + f32 acc
        interm = 4 * g * tq_ * S * 3                             # s / p / reductions (f32)
        return qkv + wo_res + outb + interm + (1 << 20)

    # Query tile: prefer 256 (MXU-width on v6e/v7x) when it divides S and fits
    # the VMEM budget, else 128, else whole sequence.
    tq = None
    for cand in (256, 128):
        if S % cand == 0 and vmem_footprint(cand) <= vmem_cap:
            tq = cand
            break
    if tq is None:
        tq = 128 if S % 128 == 0 else S
    n_qt = S // tq

    vmem_limit = int(min(max(vmem_footprint(tq) * 5 // 4, 32 * 1024 * 1024),
                         vmem_cap))

    in_specs = [
        pl.BlockSpec((1, g, tq, d_k), lambda b, qi, hg: (b, hg, qi, 0)),   # q
        pl.BlockSpec((1, g, S, d_k), lambda b, qi, hg: (b, hg, 0, 0)),     # k
        pl.BlockSpec((1, g, S, d_k), lambda b, qi, hg: (b, hg, 0, 0)),     # v
        pl.BlockSpec((HG, g, d_k, D), lambda b, qi, hg: (0, 0, 0, 0)),     # Wo (resident)
        pl.BlockSpec((1, D), lambda b, qi, hg: (0, 0)),                    # bo (resident)
    ]
    out_spec = pl.BlockSpec((1, tq, D), lambda b, qi, hg: (b, qi, 0))

    cost = pl.CostEstimate(
        flops=int(4 * B * S * S * D + 2 * B * S * D * D),
        transcendentals=int(B * H * S * S),
        bytes_accessed=int(in_bytes * (B * S * D + 2 * n_qt * B * S * D + D * D)
                           + 4 * (B * S * D + D)),
    )

    return pl.pallas_call(
        mha_attn_kernel,
        out_shape=jax.ShapeDtypeStruct((B, S, D), que.dtype),
        grid_spec=pltpu.PrefetchScalarGridSpec(
            num_scalar_prefetch=0,
            grid=(B, n_qt, HG),
            in_specs=in_specs,
            out_specs=out_spec,
            scratch_shapes=[pltpu.VMEM((tq, D), jnp.float32)],
        ),
        compiler_params=pltpu.CompilerParams(
            dimension_semantics=("parallel", "parallel", "arbitrary"),
            vmem_limit_bytes=vmem_limit,
        ),
        cost_estimate=cost,
    )(q_hm, k_hm, v_hm, wo_hm, bo)


def mha_reference(que, ke, val, params, n_heads):
    """Pure-JAX mirror of the PyTorch MultiheadAttention forward."""
    B, S, D = que.shape
    d_k = D // n_heads
    q = que @ params["wq"] + params["bq"][0]
    k = ke @ params["wk"] + params["bk"][0]
    v = val @ params["wv"] + params["bv"][0]
    q = q.reshape(B, S, n_heads, d_k).transpose(0, 2, 1, 3)
    k = k.reshape(B, S, n_heads, d_k).transpose(0, 2, 1, 3)
    v = v.reshape(B, S, n_heads, d_k).transpose(0, 2, 1, 3)
    s = jnp.einsum("bhqd,bhkd->bhqk", q, k) / jnp.sqrt(jnp.float32(d_k))
    p = jax.nn.softmax(s, axis=-1)
    o = jnp.einsum("bhqk,bhkd->bhqd", p, v)
    o = o.transpose(0, 2, 1, 3).reshape(B, S, D)
    return o @ params["wo"] + params["bo"][0]


def make_params(key, d_model):
    ks = jax.random.split(key, 8)
    n = lambda k, shape, s=0.05: (s * jax.random.normal(k, shape)).astype(jnp.float32)
    return {
        "wq": n(ks[0], (d_model, d_model)), "bq": n(ks[1], (1, d_model)),
        "wk": n(ks[2], (d_model, d_model)), "bk": n(ks[3], (1, d_model)),
        "wv": n(ks[4], (d_model, d_model)), "bv": n(ks[5], (1, d_model)),
        "wo": n(ks[6], (d_model, d_model)), "bo": n(ks[7], (1, d_model)),
    }


if __name__ == "__main__":
    # NOTE: toy shapes (D=32 < 128 lanes) per task instructions; benchmark with
    # D a multiple of 128 and S a multiple of 256 for representative numbers,
    # and pass compute_dtype=jnp.bfloat16 on v6e/v7x (keep f32 here for the
    # 1e-4 tolerance check).
    B, S, D, H = 2, 8, 32, 4

    key = jax.random.PRNGKey(0)
    kq, kk, kv, kp = jax.random.split(key, 4)
    que = jax.random.normal(kq, (B, S, D), dtype=jnp.float32)
    ke = jax.random.normal(kk, (B, S, D), dtype=jnp.float32)
    val = jax.random.normal(kv, (B, S, D), dtype=jnp.float32)
    params = make_params(kp, D)

    out = multihead_attention(que, ke, val, params, H, mask=None)
    out = jax.block_until_ready(out)

    ref = mha_reference(que, ke, val, params, H)
    assert out.shape == (B, S, D)
    err = float(jnp.max(jnp.abs(out - ref)))
    assert jnp.allclose(out, ref, atol=1e-4, rtol=1e-4), f"max abs err = {err}"

    print("KERNEL_OK")
</pallas_src>

<mosaic_0001>
module attributes {stable_mosaic.version = 11 : i64} {
  func.func @mha_attn_kernel(%arg0: i32, %arg1: i32, %arg2: i32, %arg3: memref<1x4x8x8xf32, #tpu.memory_space<vmem>>, %arg4: memref<1x4x8x8xf32, #tpu.memory_space<vmem>>, %arg5: memref<1x4x8x8xf32, #tpu.memory_space<vmem>>, %arg6: memref<1x4x8x32xf32, #tpu.memory_space<vmem>>, %arg7: memref<1x32xf32, #tpu.memory_space<vmem>>, %arg8: memref<1x8x32xf32, #tpu.memory_space<vmem>>, %arg9: memref<8x32xf32, #tpu.memory_space<vmem>>) attributes {dimension_semantics = [#tpu.dimension_semantics<parallel>, #tpu.dimension_semantics<parallel>, #tpu.dimension_semantics<arbitrary>], iteration_bounds = array<i64: 2, 1, 1>, scalar_prefetch = 0 : i64, scratch_operands = 1 : i64, tpu.core_type = #tpu.core_type<tc>, window_params = [{transform_indices = @transform_0, window_bounds = array<i64: 1, 4, 8, 8>}, {transform_indices = @transform_1, window_bounds = array<i64: 1, 4, 8, 8>}, {transform_indices = @transform_2, window_bounds = array<i64: 1, 4, 8, 8>}, {pipeline_mode = #tpu.pipeline_mode<synchronous>, transform_indices = @transform_3, window_bounds = array<i64: 1, 4, 8, 32>}, {pipeline_mode = #tpu.pipeline_mode<synchronous>, transform_indices = @transform_4, window_bounds = array<i64: 1, 32>}, {transform_indices = @transform_5, window_bounds = array<i64: 1, 8, 32>}]} {
    %c0_i32 = arith.constant 0 : i32
    %0 = arith.cmpi eq, %arg2, %c0_i32 : i32
    %1 = arith.extui %0 : i1 to i32
    %c0_i32_0 = arith.constant 0 : i32
    %2 = arith.cmpi ne, %1, %c0_i32_0 : i32
    scf.if %2 {
      %cst_28 = arith.constant 0.000000e+00 : f32
      %53 = vector.broadcast %cst_28 : f32 to vector<8x32xf32>
      %c0_29 = arith.constant 0 : index
      %c0_30 = arith.constant 0 : index
      %54 = vector.load %arg9[%c0_29, %c0_30] : memref<8x32xf32, #tpu.memory_space<vmem>>, vector<8x32xf32>
      tpu.vector_store %arg9[%c0_29, %c0_30], %53 {strides = array<i32>} : memref<8x32xf32, #tpu.memory_space<vmem>>, vector<8x32xf32>,
    } else {
    }
    %c0 = arith.constant 0 : index
    %c0_1 = arith.constant 0 : index
    %c0_2 = arith.constant 0 : index
    %c0_3 = arith.constant 0 : index
    %3 = vector.load %arg3[%c0, %c0_1, %c0_2, %c0_3] : memref<1x4x8x8xf32, #tpu.memory_space<vmem>>, vector<1x4x8x8xf32>
    %4 = vector.shape_cast %3 : vector<1x4x8x8xf32> to vector<4x8x8xf32>
    %c0_4 = arith.constant 0 : index
    %c0_5 = arith.constant 0 : index
    %c0_6 = arith.constant 0 : index
    %c0_7 = arith.constant 0 : index
    %5 = vector.load %arg4[%c0_4, %c0_5, %c0_6, %c0_7] : memref<1x4x8x8xf32, #tpu.memory_space<vmem>>, vector<1x4x8x8xf32>
    %6 = vector.shape_cast %5 : vector<1x4x8x8xf32> to vector<4x8x8xf32>
    %c0_8 = arith.constant 0 : index
    %c0_9 = arith.constant 0 : index
    %c0_10 = arith.constant 0 : index
    %c0_11 = arith.constant 0 : index
    %7 = vector.load %arg5[%c0_8, %c0_9, %c0_10, %c0_11] : memref<1x4x8x8xf32, #tpu.memory_space<vmem>>, vector<1x4x8x8xf32>
    %8 = vector.shape_cast %7 : vector<1x4x8x8xf32> to vector<4x8x8xf32>
    %9 = arith.index_cast %arg2 : i32 to index
    %c0_12 = arith.constant 0 : index
    %c0_13 = arith.constant 0 : index
    %c0_14 = arith.constant 0 : index
    %10 = vector.load %arg6[%9, %c0_12, %c0_13, %c0_14] : memref<1x4x8x32xf32, #tpu.memory_space<vmem>>, vector<1x4x8x32xf32>
    %11 = vector.shape_cast %10 : vector<1x4x8x32xf32> to vector<4x8x32xf32>
    %cst = arith.constant dense<0.000000e+00> : vector<4x8x8xf32>
    %12 = tpu.matmul %4, %6, %cst {dimension_numbers = #tpu.dot_dimension_numbers<[2], [2], [1], [1], [0, 0, 0, 1, 1, 1], [0], [0]>} : vector<4x8x8xf32>, vector<4x8x8xf32>, vector<4x8x8xf32> -> vector<4x8x8xf32>
    %cst_15 = arith.constant dense<0xFF800000> : vector<4x8xf32>
    %13 = vector.multi_reduction <maximumf>, %12, %cst_15 [2] : vector<4x8x8xf32> to vector<4x8xf32>
    %14 = vector.shape_cast %13 : vector<4x8xf32> to vector<4x8x1xf32>
    %15 = vector.broadcast %14 : vector<4x8x1xf32> to vector<4x8x8xf32>
    %16 = arith.subf %12, %15 : vector<4x8x8xf32>
    %17 = math.exp %16 : vector<4x8x8xf32>
    %cst_16 = arith.constant dense<0.000000e+00> : vector<4x8xf32>
    %18 = vector.multi_reduction <add>, %17, %cst_16 [2] : vector<4x8x8xf32> to vector<4x8xf32>
    %19 = vector.shape_cast %18 : vector<4x8xf32> to vector<4x8x1xf32>
    %20 = tpu.reciprocal %19 : vector<4x8x1xf32> -> vector<4x8x1xf32>
    %21 = vector.broadcast %20 : vector<4x8x1xf32> to vector<4x8x8xf32>
    %22 = arith.mulf %17, %21 : vector<4x8x8xf32>
    %cst_17 = arith.constant dense<0.000000e+00> : vector<4x8x8xf32>
    %23 = tpu.matmul %22, %8, %cst_17 {dimension_numbers = #tpu.dot_dimension_numbers<[2], [1], [1], [2], [0, 0, 0, 1, 1, 2], [0], [0]>} : vector<4x8x8xf32>, vector<4x8x8xf32>, vector<4x8x8xf32> -> vector<4x8x8xf32>
    %c0_18 = arith.constant 0 : index
    %c0_19 = arith.constant 0 : index
    %24 = vector.load %arg9[%c0_18, %c0_19] : memref<8x32xf32, #tpu.memory_space<vmem>>, vector<8x32xf32>
    %25 = vector.extract_strided_slice %23 {offsets = [0, 0, 0], sizes = [1, 8, 8], strides = [1, 1, 1]} : vector<4x8x8xf32> to vector<1x8x8xf32>
    %26 = vector.shape_cast %25 : vector<1x8x8xf32> to vector<8x8xf32>
    %27 = vector.extract_strided_slice %11 {offsets = [0, 0, 0], sizes = [1, 8, 32], strides = [1, 1, 1]} : vector<4x8x32xf32> to vector<1x8x32xf32>
    %28 = vector.shape_cast %27 : vector<1x8x32xf32> to vector<8x32xf32>
    %cst_20 = arith.constant dense<0.000000e+00> : vector<8x32xf32>
    %29 = tpu.matmul %26, %28, %cst_20 {dimension_numbers = #tpu.dot_dimension_numbers<[1], [0], [0], [1], [0, 0, 1, 1], [], []>} : vector<8x8xf32>, vector<8x32xf32>, vector<8x32xf32> -> vector<8x32xf32>
    %30 = arith.addf %24, %29 : vector<8x32xf32>
    %31 = vector.extract_strided_slice %23 {offsets = [1, 0, 0], sizes = [1, 8, 8], strides = [1, 1, 1]} : vector<4x8x8xf32> to vector<1x8x8xf32>
    %32 = vector.shape_cast %31 : vector<1x8x8xf32> to vector<8x8xf32>
    %33 = vector.extract_strided_slice %11 {offsets = [1, 0, 0], sizes = [1, 8, 32], strides = [1, 1, 1]} : vector<4x8x32xf32> to vector<1x8x32xf32>
    %34 = vector.shape_cast %33 : vector<1x8x32xf32> to vector<8x32xf32>
    %cst_21 = arith.constant dense<0.000000e+00> : vector<8x32xf32>
    %35 = tpu.matmul %32, %34, %cst_21 {dimension_numbers = #tpu.dot_dimension_numbers<[1], [0], [0], [1], [0, 0, 1, 1], [], []>} : vector<8x8xf32>, vector<8x32xf32>, vector<8x32xf32> -> vector<8x32xf32>
    %36 = arith.addf %30, %35 : vector<8x32xf32>
    %37 = vector.extract_strided_slice %23 {offsets = [2, 0, 0], sizes = [1, 8, 8], strides = [1, 1, 1]} : vector<4x8x8xf32> to vector<1x8x8xf32>
    %38 = vector.shape_cast %37 : vector<1x8x8xf32> to vector<8x8xf32>
    %39 = vector.extract_strided_slice %11 {offsets = [2, 0, 0], sizes = [1, 8, 32], strides = [1, 1, 1]} : vector<4x8x32xf32> to vector<1x8x32xf32>
    %40 = vector.shape_cast %39 : vector<1x8x32xf32> to vector<8x32xf32>
    %cst_22 = arith.constant dense<0.000000e+00> : vector<8x32xf32>
    %41 = tpu.matmul %38, %40, %cst_22 {dimension_numbers = #tpu.dot_dimension_numbers<[1], [0], [0], [1], [0, 0, 1, 1], [], []>} : vector<8x8xf32>, vector<8x32xf32>, vector<8x32xf32> -> vector<8x32xf32>
    %42 = arith.addf %36, %41 : vector<8x32xf32>
    %43 = vector.extract_strided_slice %23 {offsets = [3, 0, 0], sizes = [1, 8, 8], strides = [1, 1, 1]} : vector<4x8x8xf32> to vector<1x8x8xf32>
    %44 = vector.shape_cast %43 : vector<1x8x8xf32> to vector<8x8xf32>
    %45 = vector.extract_strided_slice %11 {offsets = [3, 0, 0], sizes = [1, 8, 32], strides = [1, 1, 1]} : vector<4x8x32xf32> to vector<1x8x32xf32>
    %46 = vector.shape_cast %45 : vector<1x8x32xf32> to vector<8x32xf32>
    %cst_23 = arith.constant dense<0.000000e+00> : vector<8x32xf32>
    %47 = tpu.matmul %44, %46, %cst_23 {dimension_numbers = #tpu.dot_dimension_numbers<[1], [0], [0], [1], [0, 0, 1, 1], [], []>} : vector<8x8xf32>, vector<8x32xf32>, vector<8x32xf32> -> vector<8x32xf32>
    %48 = arith.addf %42, %47 : vector<8x32xf32>
    %c0_24 = arith.constant 0 : index
    %c0_25 = arith.constant 0 : index
    %49 = vector.load %arg9[%c0_24, %c0_25] : memref<8x32xf32, #tpu.memory_space<vmem>>, vector<8x32xf32>
    tpu.vector_store %arg9[%c0_24, %c0_25], %48 {strides = array<i32>} : memref<8x32xf32, #tpu.memory_space<vmem>>, vector<8x32xf32>,
    %c0_i32_26 = arith.constant 0 : i32
    %50 = arith.cmpi eq, %arg2, %c0_i32_26 : i32
    %51 = arith.extui %50 : i1 to i32
    %c0_i32_27 = arith.constant 0 : i32
    %52 = arith.cmpi ne, %51, %c0_i32_27 : i32
    scf.if %52 {
      %c0_28 = arith.constant 0 : index
      %c0_29 = arith.constant 0 : index
      %53 = vector.load %arg9[%c0_28, %c0_29] : memref<8x32xf32, #tpu.memory_space<vmem>>, vector<8x32xf32>
      %c0_30 = arith.constant 0 : index
      %c0_31 = arith.constant 0 : index
      %54 = vector.load %arg7[%c0_30, %c0_31] : memref<1x32xf32, #tpu.memory_space<vmem>>, vector<1x32xf32>
      %55 = vector.broadcast %54 : vector<1x32xf32> to vector<8x32xf32>
      %56 = arith.addf %53, %55 : vector<8x32xf32>
      %c0_32 = arith.constant 0 : index
      %c0_33 = arith.constant 0 : index
      %c0_34 = arith.constant 0 : index
      %57 = vector.load %arg8[%c0_32, %c0_33, %c0_34] : memref<1x8x32xf32, #tpu.memory_space<vmem>>, vector<1x8x32xf32>
      %58 = vector.shape_cast %57 : vector<1x8x32xf32> to vector<8x32xf32>
      %59 = vector.shape_cast %56 : vector<8x32xf32> to vector<1x8x32xf32>
      tpu.vector_store %arg8[%c0_32, %c0_33, %c0_34], %59 {strides = array<i32>} : memref<1x8x32xf32, #tpu.memory_space<vmem>>, vector<1x8x32xf32>,
    } else {
    }
    return
  }
  func.func @transform_0(%arg0: i32, %arg1: i32, %arg2: i32) -> (i32, i32, i32, i32) {
    %c0_i32 = arith.constant 0 : i32
    %c0_i32_0 = arith.constant 0 : i32
    return %arg0, %arg2, %arg1, %c0_i32 : i32, i32, i32, i32
  }
  func.func @transform_1(%arg0: i32, %arg1: i32, %arg2: i32) -> (i32, i32, i32, i32) {
    %c0_i32 = arith.constant 0 : i32
    %c0_i32_0 = arith.constant 0 : i32
    %c0_i32_1 = arith.constant 0 : i32
    return %arg0, %arg2, %c0_i32, %c0_i32_0 : i32, i32, i32, i32
  }
  func.func @transform_2(%arg0: i32, %arg1: i32, %arg2: i32) -> (i32, i32, i32, i32) {
    %c0_i32 = arith.constant 0 : i32
    %c0_i32_0 = arith.constant 0 : i32
    %c0_i32_1 = arith.constant 0 : i32
    return %arg0, %arg2, %c0_i32, %c0_i32_0 : i32, i32, i32, i32
  }
  func.func @transform_3(%arg0: i32, %arg1: i32, %arg2: i32) -> (i32, i32, i32, i32) {
    %c0_i32 = arith.constant 0 : i32
    %c0_i32_0 = arith.constant 0 : i32
    %c0_i32_1 = arith.constant 0 : i32
    %c0_i32_2 = arith.constant 0 : i32
    %c0_i32_3 = arith.constant 0 : i32
    return %c0_i32, %c0_i32_0, %c0_i32_1, %c0_i32_2 : i32, i32, i32, i32
  }
  func.func @transform_4(%arg0: i32, %arg1: i32, %arg2: i32) -> (i32, i32) {
    %c0_i32 = arith.constant 0 : i32
    %c0_i32_0 = arith.constant 0 : i32
    %c0_i32_1 = arith.constant 0 : i32
    return %c0_i32, %c0_i32_0 : i32, i32
  }
  func.func @transform_5(%arg0: i32, %arg1: i32, %arg2: i32) -> (i32, i32, i32) {
    %c0_i32 = arith.constant 0 : i32
    %c0_i32_0 = arith.constant 0 : i32
    return %arg0, %arg1, %c0_i32 : i32, i32, i32
  }
}

</mosaic_0001>

<llo_original>
// kernel: tpu_custom_call.1
$region0: #{tpu_custom_call.1}
  #allocation0 [shape = 'u32[]', space=smem, size = 0x4, offset = 0x4, fixed_abs, tag = 'smem constant byte address 0x4 - core index']
  #allocation1 [shape = 'u32[144,128]{1,0:T(1,128)}', space=vmem, size = 0x12000, scoped, tag = 'internal scratch']
  #allocation2 [shape = 'f32[8,32]{1,0:T(8,128)}', space=vmem, size = 0x1000, scoped, tag = 'scratch operand']
  %s0 = inlined_call_operand.hbm [shape: f32[2,4,8,8], index: 0, kind: input, shape index: {}]
  %s1 = inlined_call_operand.hbm [shape: f32[2,4,8,8], index: 1, kind: input, shape index: {}]
  %s2 = inlined_call_operand.hbm [shape: f32[2,4,8,8], index: 2, kind: input, shape index: {}]
  %s3 = inlined_call_operand.hbm [shape: f32[1,4,8,32], index: 3, kind: input, shape index: {}]
  %s4 = inlined_call_operand.vmem [shape: f32[1,32], index: 4, kind: input, shape index: {}]
  %s5 = inlined_call_operand.hbm [shape: f32[2,8,32], index: 5, kind: output, shape index: {}]
  %s6 = sld [smem:[#allocation0]]
  $region77: #{tpu_custom_call.1} parent=0
    _
  %s8 = ssub.s32 1, %s6
  %s9 = scalar_select 0, %s8, %s6
  $region1: #{tpu_custom_call.1} parent=0
    #allocation3 [shape = 'u8[32768]{0}', space=vmem, size = 0x8000, scoped, tag = 'input window, operand 0']
    #allocation4 [shape = 's32[2]{0}', space=sflag, size = 0x8, scoped, tag = 'scoped memory for tpu_custom_call.1']
    #allocation5 [shape = 's32[2]{0}', space=sflag, size = 0x8, scoped, tag = 'scoped memory for tpu_custom_call.1']
    #allocation6 [shape = 'u8[32768]{0}', space=vmem, size = 0x8000, scoped, tag = 'input window, operand 1']
    #allocation7 [shape = 's32[2]{0}', space=sflag, size = 0x8, scoped, tag = 'scoped memory for tpu_custom_call.1']
    #allocation8 [shape = 'u8[32768]{0}', space=vmem, size = 0x8000, scoped, tag = 'input window, operand 2']
    #allocation9 [shape = 'u8[16384]{0}', space=vmem, size = 0x4000, scoped, tag = 'input window, operand 3, single buffered']
    #allocation10 [shape = 's32[1]{0}', space=sflag, size = 0x4, scoped, tag = 'scoped memory for tpu_custom_call.1']
    #allocation11 [shape = 'u8[8192]{0}', space=vmem, size = 0x2000, scoped, tag = 'output window, operand 0']
    %10 = vsyncpa [#allocation4], 0
    %s11 = scalar_lea.sflag [#allocation4], 1
    %12 = vsyncpa %s11, 0
    %13 = vsyncpa [#allocation7], 0
    %s14 = scalar_lea.sflag [#allocation7], 1
    %15 = vsyncpa %s14, 0
    %16 = vsyncpa [#allocation10], 0
    %17 = vsyncpa [#allocation5], 0
    %s18 = scalar_lea.sflag [#allocation5], 1
    %19 = vsyncpa %s18, 0
    loop: start=0, step=1, limit=4
    $region2: #{tpu_custom_call.1} parent=1 // loop_pre_header
      _
    $region3: #{tpu_custom_call.1} parent=1 // loop_header
      %s21 = sphi 0, %s25
      %p22 = scmp.ge.s32.totalorder %s21, 4
      %s28 = sphi 0, %s47
      %s29 = sphi 0, %s43
      %s30 = sphi 0, %s39
      %s31 = sphi 0, %s28
      %s32 = sphi 0, %s29
      %s33 = sphi 0, %s30
      %s34 = sphi 0, %s31
      %s35 = sphi 0, %s32
      %s36 = sphi 0, %s33
      %s54 = sphi 0, %s56
      %s57 = sphi 0, %s54
      %s58 = sphi 0, %s57
      %s74 = sphi 0, %s58
      %s82 = sphi 0, %s84
      %s85 = sphi 0, %s82
      %s86 = sphi 0, %s85
      %s102 = sphi 0, %s86
      %s110 = sphi 0, %s112
      %s113 = sphi 0, %s110
      %s114 = sphi 0, %s113
      %s130 = sphi 0, %s114
      %s134 = sphi 0, %s134
      %s136 = sphi 0, %s134
      %s137 = sphi 0, %s136
      %s151 = sphi 0, %s137
      %s155 = sphi 0, %s155
      %s157 = sphi 0, %s155
      %s158 = sphi 0, %s157
      %s172 = sphi 0, %s158
      %s180 = sphi 0, %s182
      %s183 = sphi 0, %s180
      %s184 = sphi 0, %s183
      %s200 = sphi 0, %s184
    $region4: #{tpu_custom_call.1} parent=1 // loop_header_branch
      %24 = sbr.rel (%p22) target = $region8
    $region5: #{tpu_custom_call.1} parent=1 // loop_body
      %s26 = ssub.s32 %s21, 1
      %s27 = ssub.s32 %s21, 2
      %s37 = sadd.s32 1, %s30
      %p38 = scmp.ge.s32.totalorder %s37, 1
      %s39 = scalar_select %p38, 0, %s37
      %s40 = sadd.s32 1, %s29
      %s41 = scalar_select %p38, %s40, %s29
      %p42 = scmp.ge.s32.totalorder %s41, 1
      %s43 = scalar_select %p42, 0, %s41
      %s44 = sadd.s32 1, %s28
      %s45 = scalar_select %p42, %s44, %s28
      %p46 = scmp.ge.s32.totalorder %s45, 2
      %s47 = scalar_select %p46, 0, %s45
      %s48 = ssub.s32 %s28, %s47
      %s49 = ssub.s32 %s30, %s39
      %s50 = sor.u32 %s48, %s49
      %s51 = ssub.s32 %s29, %s43
      %s52 = sor.u32 %s50, %s51
      %p53 = scmp.eq.s32.totalorder %s52, 0
      %s55 = sadd.s32 %s54, 1
      %s56 = scalar_select %p53, %s54, %s55
      %p59 = pneg %p53
      %p60 = scmp.eq.s32.totalorder %s21, 1
      %p61 = por %p59, %p60
      %p62 = scmp.ne.s32.totalorder %s54, %s57
      %p63 = scmp.eq.s32.totalorder %s21, 0
      %p64 = por %p62, %p63
      %p65 = scmp.ne.s32.totalorder %s54, %s57
      %p66 = scmp.eq.s32.totalorder %s26, 1
      %p67 = por %p65, %p66
      %p68 = scmp.ne.s32.totalorder %s57, %s58
      %p69 = scmp.eq.s32.totalorder %s26, 0
      %p70 = por %p68, %p69
      %p71 = scmp.ne.s32.totalorder %s57, %s58
      %p72 = scmp.eq.s32.totalorder %s27, 1
      %p73 = por %p71, %p72
      %p75 = scmp.ne.s32.totalorder %s58, %s74
      %p76 = scmp.eq.s32.totalorder %s27, 0
      %p77 = por %p75, %p76
      %s78 = ssub.s32 %s28, %s47
      %s79 = ssub.s32 %s30, %s39
      %s80 = sor.u32 %s78, %s79
      %p81 = scmp.eq.s32.totalorder %s80, 0
      %s83 = sadd.s32 %s82, 1
      %s84 = scalar_select %p81, %s82, %s83
      %p87 = pneg %p81
      %p88 = scmp.eq.s32.totalorder %s21, 1
      %p89 = por %p87, %p88
      %p90 = scmp.ne.s32.totalorder %s82, %s85
      %p91 = scmp.eq.s32.totalorder %s21, 0
      %p92 = por %p90, %p91
      %p93 = scmp.ne.s32.totalorder %s82, %s85
      %p94 = scmp.eq.s32.totalorder %s26, 1
      %p95 = por %p93, %p94
      %p96 = scmp.ne.s32.totalorder %s85, %s86
      %p97 = scmp.eq.s32.totalorder %s26, 0
      %p98 = por %p96, %p97
      %p99 = scmp.ne.s32.totalorder %s85, %s86
      %p100 = scmp.eq.s32.totalorder %s27, 1
      %p101 = por %p99, %p100
      %p103 = scmp.ne.s32.totalorder %s86, %s102
      %p104 = scmp.eq.s32.totalorder %s27, 0
      %p105 = por %p103, %p104
      %s106 = ssub.s32 %s28, %s47
      %s107 = ssub.s32 %s30, %s39
      %s108 = sor.u32 %s106, %s107
      %p109 = scmp.eq.s32.totalorder %s108, 0
      %s111 = sadd.s32 %s110, 1
      %s112 = scalar_select %p109, %s110, %s111
      %p115 = pneg %p109
      %p116 = scmp.eq.s32.totalorder %s21, 1
      %p117 = por %p115, %p116
      %p118 = scmp.ne.s32.totalorder %s110, %s113
      %p119 = scmp.eq.s32.totalorder %s21, 0
      %p120 = por %p118, %p119
      %p121 = scmp.ne.s32.totalorder %s110, %s113
      %p122 = scmp.eq.s32.totalorder %s26, 1
      %p123 = por %p121, %p122
      %p124 = scmp.ne.s32.totalorder %s113, %s114
      %p125 = scmp.eq.s32.totalorder %s26, 0
      %p126 = por %p124, %p125
      %p127 = scmp.ne.s32.totalorder %s113, %s114
      %p128 = scmp.eq.s32.totalorder %s27, 1
      %p129 = por %p127, %p128
      %p131 = scmp.ne.s32.totalorder %s114, %s130
      %p132 = scmp.eq.s32.totalorder %s27, 0
      %p133 = por %p131, %p132
      %s135 = sadd.s32 %s134, 1
      %p138 = scmp.eq.s32.totalorder %s21, 1
      %p139 = scmp.ne.s32.totalorder %s134, %s136
      %p140 = scmp.eq.s32.totalorder %s21, 0
      %p141 = por %p139, %p140
      %p142 = scmp.ne.s32.totalorder %s134, %s136
      %p143 = scmp.eq.s32.totalorder %s26, 1
      %p144 = por %p142, %p143
      %p145 = scmp.ne.s32.totalorder %s136, %s137
      %p146 = scmp.eq.s32.totalorder %s26, 0
      %p147 = por %p145, %p146
      %p148 = scmp.ne.s32.totalorder %s136, %s137
      %p149 = scmp.eq.s32.totalorder %s27, 1
      %p150 = por %p148, %p149
      %p152 = scmp.ne.s32.totalorder %s137, %s151
      %p153 = scmp.eq.s32.totalorder %s27, 0
      %p154 = por %p152, %p153
      %s156 = sadd.s32 %s155, 1
      %p159 = scmp.eq.s32.totalorder %s21, 1
      %p160 = scmp.ne.s32.totalorder %s155, %s157
      %p161 = scmp.eq.s32.totalorder %s21, 0
      %p162 = por %p160, %p161
      %p163 = scmp.ne.s32.totalorder %s155, %s157
      %p164 = scmp.eq.s32.totalorder %s26, 1
      %p165 = por %p163, %p164
      %p166 = scmp.ne.s32.totalorder %s157, %s158
      %p167 = scmp.eq.s32.totalorder %s26, 0
      %p168 = por %p166, %p167
      %p169 = scmp.ne.s32.totalorder %s157, %s158
      %p170 = scmp.eq.s32.totalorder %s27, 1
      %p171 = por %p169, %p170
      %p173 = scmp.ne.s32.totalorder %s158, %s172
      %p174 = scmp.eq.s32.totalorder %s27, 0
      %p175 = por %p173, %p174
      %s176 = ssub.s32 %s28, %s47
      %s177 = ssub.s32 %s29, %s43
      %s178 = sor.u32 %s176, %s177
      %p179 = scmp.eq.s32.totalorder %s178, 0
      %s181 = sadd.s32 %s180, 1
      %s182 = scalar_select %p179, %s180, %s181
      %p185 = pneg %p179
      %p186 = scmp.eq.s32.totalorder %s21, 1
      %p187 = por %p185, %p186
      %p188 = scmp.ne.s32.totalorder %s180, %s183
      %p189 = scmp.eq.s32.totalorder %s21, 0
      %p190 = por %p188, %p189
      %p191 = scmp.ne.s32.totalorder %s180, %s183
      %p192 = scmp.eq.s32.totalorder %s26, 1
      %p193 = por %p191, %p192
      %p194 = scmp.ne.s32.totalorder %s183, %s184
      %p195 = scmp.eq.s32.totalorder %s26, 0
      %p196 = por %p194, %p195
      %p197 = scmp.ne.s32.totalorder %s183, %s184
      %p198 = scmp.eq.s32.totalorder %s27, 1
      %p199 = por %p197, %p198
      %p201 = scmp.ne.s32.totalorder %s184, %s200
      %p202 = scmp.eq.s32.totalorder %s27, 0
      %p203 = por %p201, %p202
      %p204 = scmp.le.s32.totalorder 1, %s21
      %p205 = scmp.lt.s32.totalorder %s21, 3
      %p206 = pnand %p204, %p205
      %p207 = pneg %p206
      // Predicated region
      $region9: #{tpu_custom_call.1} parent=5 // pred_check
        _
      $region10: #{tpu_custom_call.1} parent=5 // pred_check_branch
        %209 = sbr.rel (%p206) target = $region12
      $region11: #{tpu_custom_call.1} parent=5 // pred_region
        %s210 = ssub.s32 %s21, 1
        // Predicated region
        $region13: #{tpu_custom_call.1} parent=11 // pred_check
          %p211 = pneg %p147
        $region14: #{tpu_custom_call.1} parent=11 // pred_check_branch
          %213 = sbr.rel (%p211) target = $region16
        $region15: #{tpu_custom_call.1} parent=11 // pred_region
          %s215 = ssub.s32 512, 512
          %216 = vsyncadd [#allocation10], %s215
          %s217 = sshll.u32 [#allocation9], 4
          %s218 = int_to_ptr.vmem [resolvable:$true] %s217
          %223 = dma.hbm_to_vmem [thread:$0]  %s3, 512, %s218, [#allocation10], 128, 128, 8
        $region16: #{tpu_custom_call.1} parent=11 // pred_fallthru
          _
        // Predicated region
        $region17: #{tpu_custom_call.1} parent=11 // pred_check
          %p224 = pneg %p168
        $region18: #{tpu_custom_call.1} parent=11 // pred_check_branch
          %226 = sbr.rel (%p224) target = $region20
        $region19: #{tpu_custom_call.1} parent=11 // pred_region
          _
        $region20: #{tpu_custom_call.1} parent=11 // pred_fallthru
          _
      $region12: #{tpu_custom_call.1} parent=5 // pred_fallthru
        _
      %p227 = scmp.lt.s32.totalorder %s21, 2
      // Predicated region
      $region21: #{tpu_custom_call.1} parent=5 // pred_check
        %p228 = pneg %p227
      $region22: #{tpu_custom_call.1} parent=5 // pred_check_branch
        %230 = sbr.rel (%p228) target = $region24
      $region23: #{tpu_custom_call.1} parent=5 // pred_region
        // Predicated region
        $region25: #{tpu_custom_call.1} parent=23 // pred_check
          %p231 = pneg %p64
        $region26: #{tpu_custom_call.1} parent=23 // pred_check_branch
          %233 = sbr.rel (%p231) target = $region28
        $region27: #{tpu_custom_call.1} parent=23 // pred_region
          %s234 = sand.u32 %s54, 1
          %s235 = scalar_lea.sflag [#allocation4], %s234
          %s236 = sand.u32 %s54, 1
          %s237 = smul.addr %s236, 32
          %s238 = scalar_lea.vmem [#allocation3], %s237
          %s239 = smul.u32 4, %s30
          %s241 = ssub.s32 512, 512
          %242 = vsyncadd %s235, %s241
          %s243 = sadd.s32 %s29, %s239
          %s244 = smul.addr %s28, 4
          %s245 = sadd.s32 %s243, %s244
          %s246 = smul.addr %s245, 128
          %s247 = scalar_lea.hbm %s0, %s246
          %s248 = sshll.u32 %s238, 4
          %s249 = int_to_ptr.vmem [resolvable:$true] %s248
          %254 = dma.hbm_to_vmem [thread:$0]  %s247, 512, %s249, %s235, 128, 128, 8
        $region28: #{tpu_custom_call.1} parent=23 // pred_fallthru
          _
        // Predicated region
        $region29: #{tpu_custom_call.1} parent=23 // pred_check
          %p255 = pneg %p92
        $region30: #{tpu_custom_call.1} parent=23 // pred_check_branch
          %257 = sbr.rel (%p255) target = $region32
        $region31: #{tpu_custom_call.1} parent=23 // pred_region
          %s258 = sand.u32 %s21, 1
          %s259 = scalar_lea.sflag [#allocation7], %s258
          %s260 = sand.u32 %s82, 1
          %s261 = smul.addr %s260, 32
          %s262 = scalar_lea.vmem [#allocation6], %s261
          %s263 = smul.u32 4, %s30
          %s265 = ssub.s32 512, 512
          %266 = vsyncadd %s259, %s265
          %s267 = smul.addr %s28, 4
          %s268 = sadd.s32 %s263, %s267
          %s269 = smul.addr %s268, 128
          %s270 = scalar_lea.hbm %s1, %s269
          %s271 = sshll.u32 %s262, 4
          %s272 = int_to_ptr.vmem [resolvable:$true] %s271
          %277 = dma.hbm_to_vmem [thread:$0]  %s270, 512, %s272, %s259, 128, 128, 8
        $region32: #{tpu_custom_call.1} parent=23 // pred_fallthru
          _
        // Predicated region
        $region33: #{tpu_custom_call.1} parent=23 // pred_check
          %p278 = pneg %p120
        $region34: #{tpu_custom_call.1} parent=23 // pred_check_branch
          %280 = sbr.rel (%p278) target = $region36
        $region35: #{tpu_custom_call.1} parent=23 // pred_region
          %s281 = sand.u32 %s21, 1
          %s282 = scalar_lea.sflag [#allocation7], %s281
          %s283 = sand.u32 %s110, 1
          %s284 = smul.addr %s283, 32
          %s285 = scalar_lea.vmem [#allocation8], %s284
          %s286 = smul.u32 4, %s30
          %s288 = ssub.s32 512, 512
          %289 = vsyncadd %s282, %s288
          %s290 = smul.addr %s28, 4
          %s291 = sadd.s32 %s286, %s290
          %s292 = smul.addr %s291, 128
          %s293 = scalar_lea.hbm %s2, %s292
          %s294 = sshll.u32 %s285, 4
          %s295 = int_to_ptr.vmem [resolvable:$true] %s294
          %300 = dma.hbm_to_vmem [thread:$0]  %s293, 512, %s295, %s282, 128, 128, 8
        $region36: #{tpu_custom_call.1} parent=23 // pred_fallthru
          _
      $region24: #{tpu_custom_call.1} parent=5 // pred_fallthru
        _
      %p301 = scmp.le.s32.totalorder 1, %s21
      %p302 = scmp.lt.s32.totalorder %s21, 3
      %p303 = pnand %p301, %p302
      %p304 = pneg %p303
      // Predicated region
      $region37: #{tpu_custom_call.1} parent=5 // pred_check
        _
      $region38: #{tpu_custom_call.1} parent=5 // pred_check_branch
        %306 = sbr.rel (%p303) target = $region40
      $region39: #{tpu_custom_call.1} parent=5 // pred_region
        %s307 = ssub.s32 %s21, 1
        %s308 = sand.u32 %s57, 1
        %s309 = scalar_lea.sflag [#allocation4], %s308
        %s310 = sand.u32 %s57, 1
        %s311 = smul.addr %s310, 32
        %s312 = scalar_lea.vmem [#allocation3], %s311
        // Predicated region
        $region41: #{tpu_custom_call.1} parent=39 // pred_check
          %p313 = pneg %p70
        $region42: #{tpu_custom_call.1} parent=39 // pred_check_branch
          %315 = sbr.rel (%p313) target = $region44
        $region43: #{tpu_custom_call.1} parent=39 // pred_region
          %316 = dma.done %s309, 512
        $region44: #{tpu_custom_call.1} parent=39 // pred_fallthru
          _
        %s317 = sand.u32 %s26, 1
        %s318 = scalar_lea.sflag [#allocation7], %s317
        %s319 = sand.u32 %s85, 1
        %s320 = smul.addr %s319, 32
        %s321 = scalar_lea.vmem [#allocation6], %s320
        // Predicated region
        $region45: #{tpu_custom_call.1} parent=39 // pred_check
          %p322 = pneg %p98
        $region46: #{tpu_custom_call.1} parent=39 // pred_check_branch
          %324 = sbr.rel (%p322) target = $region48
        $region47: #{tpu_custom_call.1} parent=39 // pred_region
          %325 = dma.done %s318, 512
        $region48: #{tpu_custom_call.1} parent=39 // pred_fallthru
          _
        %s326 = sand.u32 %s26, 1
        %s327 = scalar_lea.sflag [#allocation7], %s326
        %s328 = sand.u32 %s113, 1
        %s329 = smul.addr %s328, 32
        %s330 = scalar_lea.vmem [#allocation8], %s329
        // Predicated region
        $region49: #{tpu_custom_call.1} parent=39 // pred_check
          %p331 = pneg %p126
        $region50: #{tpu_custom_call.1} parent=39 // pred_check_branch
          %333 = sbr.rel (%p331) target = $region52
        $region51: #{tpu_custom_call.1} parent=39 // pred_region
          %334 = dma.done %s327, 512
        $region52: #{tpu_custom_call.1} parent=39 // pred_fallthru
          _
        // Predicated region
        $region53: #{tpu_custom_call.1} parent=39 // pred_check
          %p335 = pneg %p147
        $region54: #{tpu_custom_call.1} parent=39 // pred_check_branch
          %337 = sbr.rel (%p335) target = $region56
        $region55: #{tpu_custom_call.1} parent=39 // pred_region
          %338 = dma.done [#allocation10], 512
        $region56: #{tpu_custom_call.1} parent=39 // pred_fallthru
          _
        %s339 = sand.u32 %s57, 1
        %s340 = scalar_lea.sflag [#allocation4], %s339
        %s341 = sand.u32 %s57, 1
        %s342 = smul.addr %s341, 32
        %s343 = scalar_lea.vmem [#allocation3], %s342
        %p344 = pneg %p70
        %p345 = pneg %p67
        %s346 = sand.u32 %s26, 1
        %s347 = scalar_lea.sflag [#allocation7], %s346
        %s348 = sand.u32 %s85, 1
        %s349 = smul.addr %s348, 32
        %s350 = scalar_lea.vmem [#allocation6], %s349
        %p351 = pneg %p98
        %p352 = pneg %p95
        %s353 = sand.u32 %s26, 1
        %s354 = scalar_lea.sflag [#allocation7], %s353
        %s355 = sand.u32 %s113, 1
        %s356 = smul.addr %s355, 32
        %s357 = scalar_lea.vmem [#allocation8], %s356
        %p358 = pneg %p126
        %p359 = pneg %p123
        %p360 = pneg %p147
        %p361 = pneg %p144
        %p362 = pneg %p168
        %p363 = pneg %p165
        %p364 = pneg %p196
        %p365 = pneg %p193
        %s366 = sand.u32 %s183, 1
        %s367 = scalar_lea.sflag [#allocation5], %s366
        %s368 = sand.u32 %s183, 1
        %s369 = smul.addr %s368, 8
        %s370 = scalar_lea.vmem [#allocation11], %s369
        %s371 = smul.u32 4, %s33
        %s372 = smul.u32 4, %s33
        %s373 = smul.u32 4, %s33
        %p374 = scmp.eq.s32.totalorder %s33, 0
        // Predicated region
        $region57: #{tpu_custom_call.1} parent=39 // pred_check
          %p375 = pneg %p374
        $region58: #{tpu_custom_call.1} parent=39 // pred_check_branch
          %377 = sbr.rel (%p375) target = $region60
        $region59: #{tpu_custom_call.1} parent=39 // pred_region
          %vm378 = vcmask 261120
          %379 = vst.msk [vmem:[#allocation2] sm:$0xff] %vm378, 0.0
        $region60: #{tpu_custom_call.1} parent=39 // pred_fallthru
          _
        %v380 = vld [vmem:[%s312] sm:$0xff]
        %v381 = vld [vmem:[%s312 + $0x8] sm:$0xff]
        %v382 = vld [vmem:[%s312 + $0x10] sm:$0xff]
        %v383 = vld [vmem:[%s312 + $0x18] sm:$0xff]
        %v384 = vld [vmem:[%s321] sm:$0xff]
        %v385 = vld [vmem:[%s321 + $0x8] sm:$0xff]
        %v386 = vld [vmem:[%s321 + $0x10] sm:$0xff]
        %v387 = vld [vmem:[%s321 + $0x18] sm:$0xff]
        %v388 = vld [vmem:[%s330] sm:$0xff]
        %v389 = vld [vmem:[%s330 + $0x8] sm:$0xff]
        %v390 = vld [vmem:[%s330 + $0x10] sm:$0xff]
        %v391 = vld [vmem:[%s330 + $0x18] sm:$0xff]
        %s392 = smul.u32 %s33, 32
        %s393 = scalar_lea.vmem [#allocation9], %s392
        %v394 = vld [vmem:[%s393] sm:$0xff]
        %v395 = vld [vmem:[%s393 + $0x8] sm:$0xff]
        %v396 = vld [vmem:[%s393 + $0x10] sm:$0xff]
        %v397 = vld [vmem:[%s393 + $0x18] sm:$0xff]
        %vm398 = vcmask 64512
        %v400 = vsel %vm398, %v380, 0
        %v403 = vsel %vm398, %v384, 0
        %405 = vmatprep.subr.mxu0 0.0
        %406 = vmatpush1.xpose.msra.mxu0 %v403
        %407 = vmatprep.subr.mxu0 0.0
        %408 = vmatpush1.xpose.msra.mxu0 0.0
        %409 = vmatprep.subr.mxu0 0.0
        %410 = vmatpush1.xpose.msra.mxu0 0.0
        %411 = vmatprep.subr.mxu0 0.0
        %412 = vmatpush1.xpose.msra.mxu0 0.0
        %413 = vmatprep.subr.mxu0 0.0
        %414 = vmatpush1.xpose.msra.mxu0 0.0
        %415 = vmatprep.subr.mxu0 0.0
        %416 = vmatpush1.xpose.msra.mxu0 0.0
        %417 = vmatprep.subr.mxu0 0.0
        %418 = vmatpush1.xpose.msra.mxu0 0.0
        %419 = vmatprep.subr.mxu0 0.0
        %420 = vmatpush1.xpose.msra.mxu0 0.0
        %421 = vmatprep.subr.mxu0 0.0
        %422 = vmatpush1.xpose.msra.mxu0 0.0
        %423 = vmatprep.subr.mxu0 0.0
        %424 = vmatpush1.xpose.msra.mxu0 0.0
        %425 = vmatprep.subr.mxu0 0.0
        %426 = vmatpush1.xpose.msra.mxu0 0.0
        %427 = vmatprep.subr.mxu0 0.0
        %428 = vmatpush1.xpose.msra.mxu0 0.0
        %429 = vmatprep.subr.mxu0 0.0
        %430 = vmatpush1.xpose.msra.mxu0 0.0
        %431 = vmatprep.subr.mxu0 0.0
        %432 = vmatpush1.xpose.msra.mxu0 0.0
        %433 = vmatprep.subr.mxu0 0.0
        %434 = vmatpush1.xpose.msra.mxu0 0.0
        %435 = vmatprep.subr.mxu0 0.0
        %436 = vmatpush1.xpose.msra.mxu0 0.0
        %437 = vmatprep.subr.mxu0 0.0
        %438 = vmatpush1.xpose.msra.mxu0 0.0
        %439 = vmatprep.subr.mxu0 0.0
        %440 = vmatpush1.xpose.msra.mxu0 0.0
        %441 = vmatprep.subr.mxu0 0.0
        %442 = vmatpush1.xpose.msra.mxu0 0.0
        %443 = vmatprep.subr.mxu0 0.0
        %444 = vmatpush1.xpose.msra.mxu0 0.0
        %445 = vmatprep.subr.mxu0 0.0
        %446 = vmatpush1.xpose.msra.mxu0 0.0
        %447 = vmatprep.subr.mxu0 0.0
        %448 = vmatpush1.xpose.msra.mxu0 0.0
        %449 = vmatprep.subr.mxu0 0.0
        %450 = vmatpush1.xpose.msra.mxu0 0.0
        %451 = vmatprep.subr.mxu0 0.0
        %452 = vmatpush1.xpose.msra.mxu0 0.0
        %453 = vmatprep.subr.mxu0 0.0
        %454 = vmatpush1.xpose.msra.mxu0 0.0
        %455 = vmatprep.subr.mxu0 0.0
        %456 = vmatpush1.xpose.msra.mxu0 0.0
        %457 = vmatprep.subr.mxu0 0.0
        %458 = vmatpush1.xpose.msra.mxu0 0.0
        %459 = vmatprep.subr.mxu0 0.0
        %460 = vmatpush1.xpose.msra.mxu0 0.0
        %461 = vmatprep.subr.mxu0 0.0
        %462 = vmatpush1.xpose.msra.mxu0 0.0
        %463 = vmatprep.subr.mxu0 0.0
        %464 = vmatpush1.xpose.msra.mxu0 0.0
        %465 = vmatprep.subr.mxu0 0.0
        %466 = vmatpush1.xpose.msra.mxu0 0.0
        %467 = vmatprep.subr.mxu0 0.0
        %468 = vmatpush1.xpose.msra.mxu0 0.0
        %469 = vmatprep.mubr.f32.mxu0 0.0
        %470 = vmatmul.mubr.f32.gmra.mrb[0].mxu0 %v400
        %v471 = vpop.f32.mrb[0].mxu0
        %v472 = vadd.f32 0.0, %v471
        %v473 = vpop.f32.mrb[0].mxu0
        %474 = vdwg.mxu0
        %v476 = vsel %vm398, %v381, 0
        %v479 = vsel %vm398, %v385, 0
        %481 = vmatprep.subr.mxu0 0.0
        %482 = vmatpush1.xpose.msra.mxu0 %v479
        %483 = vmatprep.subr.mxu0 0.0
        %484 = vmatpush1.xpose.msra.mxu0 0.0
        %485 = vmatprep.subr.mxu0 0.0
        %486 = vmatpush1.xpose.msra.mxu0 0.0
        %487 = vmatprep.subr.mxu0 0.0
        %488 = vmatpush1.xpose.msra.mxu0 0.0
        %489 = vmatprep.subr.mxu0 0.0
        %490 = vmatpush1.xpose.msra.mxu0 0.0
        %491 = vmatprep.subr.mxu0 0.0
        %492 = vmatpush1.xpose.msra.mxu0 0.0
        %493 = vmatprep.subr.mxu0 0.0
        %494 = vmatpush1.xpose.msra.mxu0 0.0
        %495 = vmatprep.subr.mxu0 0.0
        %496 = vmatpush1.xpose.msra.mxu0 0.0
        %497 = vmatprep.subr.mxu0 0.0
        %498 = vmatpush1.xpose.msra.mxu0 0.0
        %499 = vmatprep.subr.mxu0 0.0
        %500 = vmatpush1.xpose.msra.mxu0 0.0
        %501 = vmatprep.subr.mxu0 0.0
        %502 = vmatpush1.xpose.msra.mxu0 0.0
        %503 = vmatprep.subr.mxu0 0.0
        %504 = vmatpush1.xpose.msra.mxu0 0.0
        %505 = vmatprep.subr.mxu0 0.0
        %506 = vmatpush1.xpose.msra.mxu0 0.0
        %507 = vmatprep.subr.mxu0 0.0
        %508 = vmatpush1.xpose.msra.mxu0 0.0
        %509 = vmatprep.subr.mxu0 0.0
        %510 = vmatpush1.xpose.msra.mxu0 0.0
        %511 = vmatprep.subr.mxu0 0.0
        %512 = vmatpush1.xpose.msra.mxu0 0.0
        %513 = vmatprep.subr.mxu0 0.0
        %514 = vmatpush1.xpose.msra.mxu0 0.0
        %515 = vmatprep.subr.mxu0 0.0
        %516 = vmatpush1.xpose.msra.mxu0 0.0
        %517 = vmatprep.subr.mxu0 0.0
        %518 = vmatpush1.xpose.msra.mxu0 0.0
        %519 = vmatprep.subr.mxu0 0.0
        %520 = vmatpush1.xpose.msra.mxu0 0.0
        %521 = vmatprep.subr.mxu0 0.0
        %522 = vmatpush1.xpose.msra.mxu0 0.0
        %523 = vmatprep.subr.mxu0 0.0
        %524 = vmatpush1.xpose.msra.mxu0 0.0
        %525 = vmatprep.subr.mxu0 0.0
        %526 = vmatpush1.xpose.msra.mxu0 0.0
        %527 = vmatprep.subr.mxu0 0.0
        %528 = vmatpush1.xpose.msra.mxu0 0.0
        %529 = vmatprep.subr.mxu0 0.0
        %530 = vmatpush1.xpose.msra.mxu0 0.0
        %531 = vmatprep.subr.mxu0 0.0
        %532 = vmatpush1.xpose.msra.mxu0 0.0
        %533 = vmatprep.subr.mxu0 0.0
        %534 = vmatpush1.xpose.msra.mxu0 0.0
        %535 = vmatprep.subr.mxu0 0.0
        %536 = vmatpush1.xpose.msra.mxu0 0.0
        %537 = vmatprep.subr.mxu0 0.0
        %538 = vmatpush1.xpose.msra.mxu0 0.0
        %539 = vmatprep.subr.mxu0 0.0
        %540 = vmatpush1.xpose.msra.mxu0 0.0
        %541 = vmatprep.subr.mxu0 0.0
        %542 = vmatpush1.xpose.msra.mxu0 0.0
        %543 = vmatprep.subr.mxu0 0.0
        %544 = vmatpush1.xpose.msra.mxu0 0.0
        %545 = vmatprep.mubr.f32.mxu0 0.0
        %546 = vmatmul.mubr.f32.gmra.mrb[0].mxu0 %v476
        %v547 = vpop.f32.mrb[0].mxu0
        %v548 = vadd.f32 0.0, %v547
        %v549 = vpop.f32.mrb[0].mxu0
        %550 = vdwg.mxu0
        %v552 = vsel %vm398, %v382, 0
        %v555 = vsel %vm398, %v386, 0
        %557 = vmatprep.subr.mxu0 0.0
        %558 = vmatpush1.xpose.msra.mxu0 %v555
        %559 = vmatprep.subr.mxu0 0.0
        %560 = vmatpush1.xpose.msra.mxu0 0.0
        %561 = vmatprep.subr.mxu0 0.0
        %562 = vmatpush1.xpose.msra.mxu0 0.0
        %563 = vmatprep.subr.mxu0 0.0
        %564 = vmatpush1.xpose.msra.mxu0 0.0
        %565 = vmatprep.subr.mxu0 0.0
        %566 = vmatpush1.xpose.msra.mxu0 0.0
        %567 = vmatprep.subr.mxu0 0.0
        %568 = vmatpush1.xpose.msra.mxu0 0.0
        %569 = vmatprep.subr.mxu0 0.0
        %570 = vmatpush1.xpose.msra.mxu0 0.0
        %571 = vmatprep.subr.mxu0 0.0
        %572 = vmatpush1.xpose.msra.mxu0 0.0
        %573 = vmatprep.subr.mxu0 0.0
        %574 = vmatpush1.xpose.msra.mxu0 0.0
        %575 = vmatprep.subr.mxu0 0.0
        %576 = vmatpush1.xpose.msra.mxu0 0.0
        %577 = vmatprep.subr.mxu0 0.0
        %578 = vmatpush1.xpose.msra.mxu0 0.0
        %579 = vmatprep.subr.mxu0 0.0
        %580 = vmatpush1.xpose.msra.mxu0 0.0
        %581 = vmatprep.subr.mxu0 0.0
        %582 = vmatpush1.xpose.msra.mxu0 0.0
        %583 = vmatprep.subr.mxu0 0.0
        %584 = vmatpush1.xpose.msra.mxu0 0.0
        %585 = vmatprep.subr.mxu0 0.0
        %586 = vmatpush1.xpose.msra.mxu0 0.0
        %587 = vmatprep.subr.mxu0 0.0
        %588 = vmatpush1.xpose.msra.mxu0 0.0
        %589 = vmatprep.subr.mxu0 0.0
        %590 = vmatpush1.xpose.msra.mxu0 0.0
        %591 = vmatprep.subr.mxu0 0.0
        %592 = vmatpush1.xpose.msra.mxu0 0.0
        %593 = vmatprep.subr.mxu0 0.0
        %594 = vmatpush1.xpose.msra.mxu0 0.0
        %595 = vmatprep.subr.mxu0 0.0
        %596 = vmatpush1.xpose.msra.mxu0 0.0
        %597 = vmatprep.subr.mxu0 0.0
        %598 = vmatpush1.xpose.msra.mxu0 0.0
        %599 = vmatprep.subr.mxu0 0.0
        %600 = vmatpush1.xpose.msra.mxu0 0.0
        %601 = vmatprep.subr.mxu0 0.0
        %602 = vmatpush1.xpose.msra.mxu0 0.0
        %603 = vmatprep.subr.mxu0 0.0
        %604 = vmatpush1.xpose.msra.mxu0 0.0
        %605 = vmatprep.subr.mxu0 0.0
        %606 = vmatpush1.xpose.msra.mxu0 0.0
        %607 = vmatprep.subr.mxu0 0.0
        %608 = vmatpush1.xpose.msra.mxu0 0.0
        %609 = vmatprep.subr.mxu0 0.0
        %610 = vmatpush1.xpose.msra.mxu0 0.0
        %611 = vmatprep.subr.mxu0 0.0
        %612 = vmatpush1.xpose.msra.mxu0 0.0
        %613 = vmatprep.subr.mxu0 0.0
        %614 = vmatpush1.xpose.msra.mxu0 0.0
        %615 = vmatprep.subr.mxu0 0.0
        %616 = vmatpush1.xpose.msra.mxu0 0.0
        %617 = vmatprep.subr.mxu0 0.0
        %618 = vmatpush1.xpose.msra.mxu0 0.0
        %619 = vmatprep.subr.mxu0 0.0
        %620 = vmatpush1.xpose.msra.mxu0 0.0
        %621 = vmatprep.mubr.f32.mxu0 0.0
        %622 = vmatmul.mubr.f32.gmra.mrb[0].mxu0 %v552
        %v623 = vpop.f32.mrb[0].mxu0
        %v624 = vadd.f32 0.0, %v623
        %v625 = vpop.f32.mrb[0].mxu0
        %626 = vdwg.mxu0
        %v628 = vsel %vm398, %v383, 0
        %v631 = vsel %vm398, %v387, 0
        %633 = vmatprep.subr.mxu0 0.0
        %634 = vmatpush1.xpose.msra.mxu0 %v631
        %635 = vmatprep.subr.mxu0 0.0
        %636 = vmatpush1.xpose.msra.mxu0 0.0
        %637 = vmatprep.subr.mxu0 0.0
        %638 = vmatpush1.xpose.msra.mxu0 0.0
        %639 = vmatprep.subr.mxu0 0.0
        %640 = vmatpush1.xpose.msra.mxu0 0.0
        %641 = vmatprep.subr.mxu0 0.0
        %642 = vmatpush1.xpose.msra.mxu0 0.0
        %643 = vmatprep.subr.mxu0 0.0
        %644 = vmatpush1.xpose.msra.mxu0 0.0
        %645 = vmatprep.subr.mxu0 0.0
        %646 = vmatpush1.xpose.msra.mxu0 0.0
        %647 = vmatprep.subr.mxu0 0.0
        %648 = vmatpush1.xpose.msra.mxu0 0.0
        %649 = vmatprep.subr.mxu0 0.0
        %650 = vmatpush1.xpose.msra.mxu0 0.0
        %651 = vmatprep.subr.mxu0 0.0
        %652 = vmatpush1.xpose.msra.mxu0 0.0
        %653 = vmatprep.subr.mxu0 0.0
        %654 = vmatpush1.xpose.msra.mxu0 0.0
        %655 = vmatprep.subr.mxu0 0.0
        %656 = vmatpush1.xpose.msra.mxu0 0.0
        %657 = vmatprep.subr.mxu0 0.0
        %658 = vmatpush1.xpose.msra.mxu0 0.0
        %659 = vmatprep.subr.mxu0 0.0
        %660 = vmatpush1.xpose.msra.mxu0 0.0
        %661 = vmatprep.subr.mxu0 0.0
        %662 = vmatpush1.xpose.msra.mxu0 0.0
        %663 = vmatprep.subr.mxu0 0.0
        %664 = vmatpush1.xpose.msra.mxu0 0.0
        %665 = vmatprep.subr.mxu0 0.0
        %666 = vmatpush1.xpose.msra.mxu0 0.0
        %667 = vmatprep.subr.mxu0 0.0
        %668 = vmatpush1.xpose.msra.mxu0 0.0
        %669 = vmatprep.subr.mxu0 0.0
        %670 = vmatpush1.xpose.msra.mxu0 0.0
        %671 = vmatprep.subr.mxu0 0.0
        %672 = vmatpush1.xpose.msra.mxu0 0.0
        %673 = vmatprep.subr.mxu0 0.0
        %674 = vmatpush1.xpose.msra.mxu0 0.0
        %675 = vmatprep.subr.mxu0 0.0
        %676 = vmatpush1.xpose.msra.mxu0 0.0
        %677 = vmatprep.subr.mxu0 0.0
        %678 = vmatpush1.xpose.msra.mxu0 0.0
        %679 = vmatprep.subr.mxu0 0.0
        %680 = vmatpush1.xpose.msra.mxu0 0.0
        %681 = vmatprep.subr.mxu0 0.0
        %682 = vmatpush1.xpose.msra.mxu0 0.0
        %683 = vmatprep.subr.mxu0 0.0
        %684 = vmatpush1.xpose.msra.mxu0 0.0
        %685 = vmatprep.subr.mxu0 0.0
        %686 = vmatpush1.xpose.msra.mxu0 0.0
        %687 = vmatprep.subr.mxu0 0.0
        %688 = vmatpush1.xpose.msra.mxu0 0.0
        %689 = vmatprep.subr.mxu0 0.0
        %690 = vmatpush1.xpose.msra.mxu0 0.0
        %691 = vmatprep.subr.mxu0 0.0
        %692 = vmatpush1.xpose.msra.mxu0 0.0
        %693 = vmatprep.subr.mxu0 0.0
        %694 = vmatpush1.xpose.msra.mxu0 0.0
        %695 = vmatprep.subr.mxu0 0.0
        %696 = vmatpush1.xpose.msra.mxu0 0.0
        %697 = vmatprep.mubr.f32.mxu0 0.0
        %698 = vmatmul.mubr.f32.gmra.mrb[0].mxu0 %v628
        %v699 = vpop.f32.mrb[0].mxu0
        %v700 = vadd.f32 0.0, %v699
        %v701 = vpop.f32.mrb[0].mxu0
        %702 = vdwg.mxu0
        %v703 = vsel %vm398, %v472, -inf
        %704 = vmax.xlane.f32.xlu0 %v703
        %v705 = vpop.xlane.xlu0 %704
        %v706 = vsel %vm398, %v548, -inf
        %707 = vmax.xlane.f32.xlu0 %v706
        %v708 = vpop.xlane.xlu0 %707
        %v709 = vsel %vm398, %v624, -inf
        %710 = vmax.xlane.f32.xlu0 %v709
        %v711 = vpop.xlane.xlu0 %710
        %v712 = vsel %vm398, %v700, -inf
        %713 = vmax.xlane.f32.xlu0 %v712
        %v714 = vpop.xlane.xlu0 %713
        %v715 = vsub.f32 %v472, %v705
        %v716 = vsub.f32 %v548, %v708
        %v717 = vsub.f32 %v624, %v711
        %v718 = vsub.f32 %v700, %v714
        %v719 = vmul.f32 %v715, 1.442695
        %v720 = vpow.pop %v719
        %v721 = vmul.f32 %v716, 1.442695
        %v722 = vpow.pop %v721
        %v723 = vmul.f32 %v717, 1.442695
        %v724 = vpow.pop %v723
        %v725 = vmul.f32 %v718, 1.442695
        %v726 = vpow.pop %v725
        %v727 = vsel %vm398, %v720, 0.0
        %728 = vadd.xlane.f32.xlu0 %v727
        %v729 = vpop.xlane.xlu0 %728
        %v730 = vsel %vm398, %v722, 0.0
        %731 = vadd.xlane.f32.xlu0 %v730
        %v732 = vpop.xlane.xlu0 %731
        %v733 = vsel %vm398, %v724, 0.0
        %734 = vadd.xlane.f32.xlu0 %v733
        %v735 = vpop.xlane.xlu0 %734
        %v736 = vsel %vm398, %v726, 0.0
        %737 = vadd.xlane.f32.xlu0 %v736
        %v738 = vpop.xlane.xlu0 %737
        %v739 = vrcp.pop %v729
        %v740 = vrcp.pop %v732
        %v741 = vrcp.pop %v735
        %v742 = vrcp.pop %v738
        %v743 = vmul.f32 %v720, %v739
        %v744 = vmul.f32 %v722, %v740
        %v745 = vmul.f32 %v724, %v741
        %v746 = vmul.f32 %v726, %v742
        %v748 = vsel %vm398, %v743, 0
        %750 = vmatprep.subr.mxu0 0.0
        %751 = vmatpush1.msra.mxu0 %v388
        %752 = vmatprep.subr.mxu0 0.0
        %753 = vmatpush1.msra.mxu0 0.0
        %754 = vmatprep.subr.mxu0 0.0
        %755 = vmatpush1.msra.mxu0 0.0
        %756 = vmatprep.subr.mxu0 0.0
        %757 = vmatpush1.msra.mxu0 0.0
        %758 = vmatprep.subr.mxu0 0.0
        %759 = vmatpush1.msra.mxu0 0.0
        %760 = vmatprep.subr.mxu0 0.0
        %761 = vmatpush1.msra.mxu0 0.0
        %762 = vmatprep.subr.mxu0 0.0
        %763 = vmatpush1.msra.mxu0 0.0
        %764 = vmatprep.subr.mxu0 0.0
        %765 = vmatpush1.msra.mxu0 0.0
        %766 = vmatprep.subr.mxu0 0.0
        %767 = vmatpush1.msra.mxu0 0.0
        %768 = vmatprep.subr.mxu0 0.0
        %769 = vmatpush1.msra.mxu0 0.0
        %770 = vmatprep.subr.mxu0 0.0
        %771 = vmatpush1.msra.mxu0 0.0
        %772 = vmatprep.subr.mxu0 0.0
        %773 = vmatpush1.msra.mxu0 0.0
        %774 = vmatprep.subr.mxu0 0.0
        %775 = vmatpush1.msra.mxu0 0.0
        %776 = vmatprep.subr.mxu0 0.0
        %777 = vmatpush1.msra.mxu0 0.0
        %778 = vmatprep.subr.mxu0 0.0
        %779 = vmatpush1.msra.mxu0 0.0
        %780 = vmatprep.subr.mxu0 0.0
        %781 = vmatpush1.msra.mxu0 0.0
        %782 = vmatprep.subr.mxu0 0.0
        %783 = vmatpush1.msra.mxu0 0.0
        %784 = vmatprep.subr.mxu0 0.0
        %785 = vmatpush1.msra.mxu0 0.0
        %786 = vmatprep.subr.mxu0 0.0
        %787 = vmatpush1.msra.mxu0 0.0
        %788 = vmatprep.subr.mxu0 0.0
        %789 = vmatpush1.msra.mxu0 0.0
        %790 = vmatprep.subr.mxu0 0.0
        %791 = vmatpush1.msra.mxu0 0.0
        %792 = vmatprep.subr.mxu0 0.0
        %793 = vmatpush1.msra.mxu0 0.0
        %794 = vmatprep.subr.mxu0 0.0
        %795 = vmatpush1.msra.mxu0 0.0
        %796 = vmatprep.subr.mxu0 0.0
        %797 = vmatpush1.msra.mxu0 0.0
        %798 = vmatprep.subr.mxu0 0.0
        %799 = vmatpush1.msra.mxu0 0.0
        %800 = vmatprep.subr.mxu0 0.0
        %801 = vmatpush1.msra.mxu0 0.0
        %802 = vmatprep.subr.mxu0 0.0
        %803 = vmatpush1.msra.mxu0 0.0
        %804 = vmatprep.subr.mxu0 0.0
        %805 = vmatpush1.msra.mxu0 0.0
        %806 = vmatprep.subr.mxu0 0.0
        %807 = vmatpush1.msra.mxu0 0.0
        %808 = vmatprep.subr.mxu0 0.0
        %809 = vmatpush1.msra.mxu0 0.0
        %810 = vmatprep.subr.mxu0 0.0
        %811 = vmatpush1.msra.mxu0 0.0
        %812 = vmatprep.subr.mxu0 0.0
        %813 = vmatpush1.msra.mxu0 0.0
        %814 = vmatprep.mubr.f32.mxu0 0.0
        %815 = vmatmul.mubr.f32.gmra.mrb[0].mxu0 %v748
        %v816 = vpop.f32.mrb[0].mxu0
        %v817 = vadd.f32 0.0, %v816
        %v818 = vpop.f32.mrb[0].mxu0
        %819 = vdwg.mxu0
        %v821 = vsel %vm398, %v744, 0
        %823 = vmatprep.subr.mxu0 0.0
        %824 = vmatpush1.msra.mxu0 %v389
        %825 = vmatprep.subr.mxu0 0.0
        %826 = vmatpush1.msra.mxu0 0.0
        %827 = vmatprep.subr.mxu0 0.0
        %828 = vmatpush1.msra.mxu0 0.0
        %829 = vmatprep.subr.mxu0 0.0
        %830 = vmatpush1.msra.mxu0 0.0
        %831 = vmatprep.subr.mxu0 0.0
        %832 = vmatpush1.msra.mxu0 0.0
        %833 = vmatprep.subr.mxu0 0.0
        %834 = vmatpush1.msra.mxu0 0.0
        %835 = vmatprep.subr.mxu0 0.0
        %836 = vmatpush1.msra.mxu0 0.0
        %837 = vmatprep.subr.mxu0 0.0
        %838 = vmatpush1.msra.mxu0 0.0
        %839 = vmatprep.subr.mxu0 0.0
        %840 = vmatpush1.msra.mxu0 0.0
        %841 = vmatprep.subr.mxu0 0.0
        %842 = vmatpush1.msra.mxu0 0.0
        %843 = vmatprep.subr.mxu0 0.0
        %844 = vmatpush1.msra.mxu0 0.0
        %845 = vmatprep.subr.mxu0 0.0
        %846 = vmatpush1.msra.mxu0 0.0
        %847 = vmatprep.subr.mxu0 0.0
        %848 = vmatpush1.msra.mxu0 0.0
        %849 = vmatprep.subr.mxu0 0.0
        %850 = vmatpush1.msra.mxu0 0.0
        %851 = vmatprep.subr.mxu0 0.0
        %852 = vmatpush1.msra.mxu0 0.0
        %853 = vmatprep.subr.mxu0 0.0
        %854 = vmatpush1.msra.mxu0 0.0
        %855 = vmatprep.subr.mxu0 0.0
        %856 = vmatpush1.msra.mxu0 0.0
        %857 = vmatprep.subr.mxu0 0.0
        %858 = vmatpush1.msra.mxu0 0.0
        %859 = vmatprep.subr.mxu0 0.0
        %860 = vmatpush1.msra.mxu0 0.0
        %861 = vmatprep.subr.mxu0 0.0
        %862 = vmatpush1.msra.mxu0 0.0
        %863 = vmatprep.subr.mxu0 0.0
        %864 = vmatpush1.msra.mxu0 0.0
        %865 = vmatprep.subr.mxu0 0.0
        %866 = vmatpush1.msra.mxu0 0.0
        %867 = vmatprep.subr.mxu0 0.0
        %868 = vmatpush1.msra.mxu0 0.0
        %869 = vmatprep.subr.mxu0 0.0
        %870 = vmatpush1.msra.mxu0 0.0
        %871 = vmatprep.subr.mxu0 0.0
        %872 = vmatpush1.msra.mxu0 0.0
        %873 = vmatprep.subr.mxu0 0.0
        %874 = vmatpush1.msra.mxu0 0.0
        %875 = vmatprep.subr.mxu0 0.0
        %876 = vmatpush1.msra.mxu0 0.0
        %877 = vmatprep.subr.mxu0 0.0
        %878 = vmatpush1.msra.mxu0 0.0
        %879 = vmatprep.subr.mxu0 0.0
        %880 = vmatpush1.msra.mxu0 0.0
        %881 = vmatprep.subr.mxu0 0.0
        %882 = vmatpush1.msra.mxu0 0.0
        %883 = vmatprep.subr.mxu0 0.0
        %884 = vmatpush1.msra.mxu0 0.0
        %885 = vmatprep.subr.mxu0 0.0
        %886 = vmatpush1.msra.mxu0 0.0
        %887 = vmatprep.mubr.f32.mxu0 0.0
        %888 = vmatmul.mubr.f32.gmra.mrb[0].mxu0 %v821
        %v889 = vpop.f32.mrb[0].mxu0
        %v890 = vadd.f32 0.0, %v889
        %v891 = vpop.f32.mrb[0].mxu0
        %892 = vdwg.mxu0
        %v894 = vsel %vm398, %v745, 0
        %896 = vmatprep.subr.mxu0 0.0
        %897 = vmatpush1.msra.mxu0 %v390
        %898 = vmatprep.subr.mxu0 0.0
        %899 = vmatpush1.msra.mxu0 0.0
        %900 = vmatprep.subr.mxu0 0.0
        %901 = vmatpush1.msra.mxu0 0.0
        %902 = vmatprep.subr.mxu0 0.0
        %903 = vmatpush1.msra.mxu0 0.0
        %904 = vmatprep.subr.mxu0 0.0
        %905 = vmatpush1.msra.mxu0 0.0
        %906 = vmatprep.subr.mxu0 0.0
        %907 = vmatpush1.msra.mxu0 0.0
        %908 = vmatprep.subr.mxu0 0.0
        %909 = vmatpush1.msra.mxu0 0.0
        %910 = vmatprep.subr.mxu0 0.0
        %911 = vmatpush1.msra.mxu0 0.0
        %912 = vmatprep.subr.mxu0 0.0
        %913 = vmatpush1.msra.mxu0 0.0
        %914 = vmatprep.subr.mxu0 0.0
        %915 = vmatpush1.msra.mxu0 0.0
        %916 = vmatprep.subr.mxu0 0.0
        %917 = vmatpush1.msra.mxu0 0.0
        %918 = vmatprep.subr.mxu0 0.0
        %919 = vmatpush1.msra.mxu0 0.0
        %920 = vmatprep.subr.mxu0 0.0
        %921 = vmatpush1.msra.mxu0 0.0
        %922 = vmatprep.subr.mxu0 0.0
        %923 = vmatpush1.msra.mxu0 0.0
        %924 = vmatprep.subr.mxu0 0.0
        %925 = vmatpush1.msra.mxu0 0.0
        %926 = vmatprep.subr.mxu0 0.0
        %927 = vmatpush1.msra.mxu0 0.0
        %928 = vmatprep.subr.mxu0 0.0
        %929 = vmatpush1.msra.mxu0 0.0
        %930 = vmatprep.subr.mxu0 0.0
        %931 = vmatpush1.msra.mxu0 0.0
        %932 = vmatprep.subr.mxu0 0.0
        %933 = vmatpush1.msra.mxu0 0.0
        %934 = vmatprep.subr.mxu0 0.0
        %935 = vmatpush1.msra.mxu0 0.0
        %936 = vmatprep.subr.mxu0 0.0
        %937 = vmatpush1.msra.mxu0 0.0
        %938 = vmatprep.subr.mxu0 0.0
        %939 = vmatpush1.msra.mxu0 0.0
        %940 = vmatprep.subr.mxu0 0.0
        %941 = vmatpush1.msra.mxu0 0.0
        %942 = vmatprep.subr.mxu0 0.0
        %943 = vmatpush1.msra.mxu0 0.0
        %944 = vmatprep.subr.mxu0 0.0
        %945 = vmatpush1.msra.mxu0 0.0
        %946 = vmatprep.subr.mxu0 0.0
        %947 = vmatpush1.msra.mxu0 0.0
        %948 = vmatprep.subr.mxu0 0.0
        %949 = vmatpush1.msra.mxu0 0.0
        %950 = vmatprep.subr.mxu0 0.0
        %951 = vmatpush1.msra.mxu0 0.0
        %952 = vmatprep.subr.mxu0 0.0
        %953 = vmatpush1.msra.mxu0 0.0
        %954 = vmatprep.subr.mxu0 0.0
        %955 = vmatpush1.msra.mxu0 0.0
        %956 = vmatprep.subr.mxu0 0.0
        %957 = vmatpush1.msra.mxu0 0.0
        %958 = vmatprep.subr.mxu0 0.0
        %959 = vmatpush1.msra.mxu0 0.0
        %960 = vmatprep.mubr.f32.mxu0 0.0
        %961 = vmatmul.mubr.f32.gmra.mrb[0].mxu0 %v894
        %v962 = vpop.f32.mrb[0].mxu0
        %v963 = vadd.f32 0.0, %v962
        %v964 = vpop.f32.mrb[0].mxu0
        %965 = vdwg.mxu0
        %v967 = vsel %vm398, %v746, 0
        %969 = vmatprep.subr.mxu0 0.0
        %970 = vmatpush1.msra.mxu0 %v391
        %971 = vmatprep.subr.mxu0 0.0
        %972 = vmatpush1.msra.mxu0 0.0
        %973 = vmatprep.subr.mxu0 0.0
        %974 = vmatpush1.msra.mxu0 0.0
        %975 = vmatprep.subr.mxu0 0.0
        %976 = vmatpush1.msra.mxu0 0.0
        %977 = vmatprep.subr.mxu0 0.0
        %978 = vmatpush1.msra.mxu0 0.0
        %979 = vmatprep.subr.mxu0 0.0
        %980 = vmatpush1.msra.mxu0 0.0
        %981 = vmatprep.subr.mxu0 0.0
        %982 = vmatpush1.msra.mxu0 0.0
        %983 = vmatprep.subr.mxu0 0.0
        %984 = vmatpush1.msra.mxu0 0.0
        %985 = vmatprep.subr.mxu0 0.0
        %986 = vmatpush1.msra.mxu0 0.0
        %987 = vmatprep.subr.mxu0 0.0
        %988 = vmatpush1.msra.mxu0 0.0
        %989 = vmatprep.subr.mxu0 0.0
        %990 = vmatpush1.msra.mxu0 0.0
        %991 = vmatprep.subr.mxu0 0.0
        %992 = vmatpush1.msra.mxu0 0.0
        %993 = vmatprep.subr.mxu0 0.0
        %994 = vmatpush1.msra.mxu0 0.0
        %995 = vmatprep.subr.mxu0 0.0
        %996 = vmatpush1.msra.mxu0 0.0
        %997 = vmatprep.subr.mxu0 0.0
        %998 = vmatpush1.msra.mxu0 0.0
        %999 = vmatprep.subr.mxu0 0.0
        %1000 = vmatpush1.msra.mxu0 0.0
        %1001 = vmatprep.subr.mxu0 0.0
        %1002 = vmatpush1.msra.mxu0 0.0
        %1003 = vmatprep.subr.mxu0 0.0
        %1004 = vmatpush1.msra.mxu0 0.0
        %1005 = vmatprep.subr.mxu0 0.0
        %1006 = vmatpush1.msra.mxu0 0.0
        %1007 = vmatprep.subr.mxu0 0.0
        %1008 = vmatpush1.msra.mxu0 0.0
        %1009 = vmatprep.subr.mxu0 0.0
        %1010 = vmatpush1.msra.mxu0 0.0
        %1011 = vmatprep.subr.mxu0 0.0
        %1012 = vmatpush1.msra.mxu0 0.0
        %1013 = vmatprep.subr.mxu0 0.0
        %1014 = vmatpush1.msra.mxu0 0.0
        %1015 = vmatprep.subr.mxu0 0.0
        %1016 = vmatpush1.msra.mxu0 0.0
        %1017 = vmatprep.subr.mxu0 0.0
        %1018 = vmatpush1.msra.mxu0 0.0
        %1019 = vmatprep.subr.mxu0 0.0
        %1020 = vmatpush1.msra.mxu0 0.0
        %1021 = vmatprep.subr.mxu0 0.0
        %1022 = vmatpush1.msra.mxu0 0.0
        %1023 = vmatprep.subr.mxu0 0.0
        %1024 = vmatpush1.msra.mxu0 0.0
        %1025 = vmatprep.subr.mxu0 0.0
        %1026 = vmatpush1.msra.mxu0 0.0
        %1027 = vmatprep.subr.mxu0 0.0
        %1028 = vmatpush1.msra.mxu0 0.0
        %1029 = vmatprep.subr.mxu0 0.0
        %1030 = vmatpush1.msra.mxu0 0.0
        %1031 = vmatprep.subr.mxu0 0.0
        %1032 = vmatpush1.msra.mxu0 0.0
        %1033 = vmatprep.mubr.f32.mxu0 0.0
        %1034 = vmatmul.mubr.f32.gmra.mrb[0].mxu0 %v967
        %v1035 = vpop.f32.mrb[0].mxu0
        %v1036 = vadd.f32 0.0, %v1035
        %v1037 = vpop.f32.mrb[0].mxu0
        %1038 = vdwg.mxu0
        %v1039 = vld [vmem:[#allocation2] sm:$0xff]
        %v1041 = vsel %vm398, %v817, 0
        %1043 = vmatprep.subr.mxu0 0.0
        %1044 = vmatpush1.msra.mxu0 %v394
        %1045 = vmatprep.subr.mxu0 0.0
        %1046 = vmatpush1.msra.mxu0 0.0
        %1047 = vmatprep.subr.mxu0 0.0
        %1048 = vmatpush1.msra.mxu0 0.0
        %1049 = vmatprep.subr.mxu0 0.0
        %1050 = vmatpush1.msra.mxu0 0.0
        %1051 = vmatprep.subr.mxu0 0.0
        %1052 = vmatpush1.msra.mxu0 0.0
        %1053 = vmatprep.subr.mxu0 0.0
        %1054 = vmatpush1.msra.mxu0 0.0
        %1055 = vmatprep.subr.mxu0 0.0
        %1056 = vmatpush1.msra.mxu0 0.0
        %1057 = vmatprep.subr.mxu0 0.0
        %1058 = vmatpush1.msra.mxu0 0.0
        %1059 = vmatprep.subr.mxu0 0.0
        %1060 = vmatpush1.msra.mxu0 0.0
        %1061 = vmatprep.subr.mxu0 0.0
        %1062 = vmatpush1.msra.mxu0 0.0
        %1063 = vmatprep.subr.mxu0 0.0
        %1064 = vmatpush1.msra.mxu0 0.0
        %1065 = vmatprep.subr.mxu0 0.0
        %1066 = vmatpush1.msra.mxu0 0.0
        %1067 = vmatprep.subr.mxu0 0.0
        %1068 = vmatpush1.msra.mxu0 0.0
        %1069 = vmatprep.subr.mxu0 0.0
        %1070 = vmatpush1.msra.mxu0 0.0
        %1071 = vmatprep.subr.mxu0 0.0
        %1072 = vmatpush1.msra.mxu0 0.0
        %1073 = vmatprep.subr.mxu0 0.0
        %1074 = vmatpush1.msra.mxu0 0.0
        %1075 = vmatprep.subr.mxu0 0.0
        %1076 = vmatpush1.msra.mxu0 0.0
        %1077 = vmatprep.subr.mxu0 0.0
        %1078 = vmatpush1.msra.mxu0 0.0
        %1079 = vmatprep.subr.mxu0 0.0
        %1080 = vmatpush1.msra.mxu0 0.0
        %1081 = vmatprep.subr.mxu0 0.0
        %1082 = vmatpush1.msra.mxu0 0.0
        %1083 = vmatprep.subr.mxu0 0.0
        %1084 = vmatpush1.msra.mxu0 0.0
        %1085 = vmatprep.subr.mxu0 0.0
        %1086 = vmatpush1.msra.mxu0 0.0
        %1087 = vmatprep.subr.mxu0 0.0
        %1088 = vmatpush1.msra.mxu0 0.0
        %1089 = vmatprep.subr.mxu0 0.0
        %1090 = vmatpush1.msra.mxu0 0.0
        %1091 = vmatprep.subr.mxu0 0.0
        %1092 = vmatpush1.msra.mxu0 0.0
        %1093 = vmatprep.subr.mxu0 0.0
        %1094 = vmatpush1.msra.mxu0 0.0
        %1095 = vmatprep.subr.mxu0 0.0
        %1096 = vmatpush1.msra.mxu0 0.0
        %1097 = vmatprep.subr.mxu0 0.0
        %1098 = vmatpush1.msra.mxu0 0.0
        %1099 = vmatprep.subr.mxu0 0.0
        %1100 = vmatpush1.msra.mxu0 0.0
        %1101 = vmatprep.subr.mxu0 0.0
        %1102 = vmatpush1.msra.mxu0 0.0
        %1103 = vmatprep.subr.mxu0 0.0
        %1104 = vmatpush1.msra.mxu0 0.0
        %1105 = vmatprep.subr.mxu0 0.0
        %1106 = vmatpush1.msra.mxu0 0.0
        %1107 = vmatprep.mubr.f32.mxu0 0.0
        %1108 = vmatmul.mubr.f32.gmra.mrb[0].mxu0 %v1041
        %v1109 = vpop.f32.mrb[0].mxu0
        %v1110 = vadd.f32 0.0, %v1109
        %v1111 = vpop.f32.mrb[0].mxu0
        %1112 = vdwg.mxu0
        %v1113 = vadd.f32 %v1039, %v1110
        %v1115 = vsel %vm398, %v890, 0
        %1117 = vmatprep.subr.mxu0 0.0
        %1118 = vmatpush1.msra.mxu0 %v395
        %1119 = vmatprep.subr.mxu0 0.0
        %1120 = vmatpush1.msra.mxu0 0.0
        %1121 = vmatprep.subr.mxu0 0.0
        %1122 = vmatpush1.msra.mxu0 0.0
        %1123 = vmatprep.subr.mxu0 0.0
        %1124 = vmatpush1.msra.mxu0 0.0
        %1125 = vmatprep.subr.mxu0 0.0
        %1126 = vmatpush1.msra.mxu0 0.0
        %1127 = vmatprep.subr.mxu0 0.0
        %1128 = vmatpush1.msra.mxu0 0.0
        %1129 = vmatprep.subr.mxu0 0.0
        %1130 = vmatpush1.msra.mxu0 0.0
        %1131 = vmatprep.subr.mxu0 0.0
        %1132 = vmatpush1.msra.mxu0 0.0
        %1133 = vmatprep.subr.mxu0 0.0
        %1134 = vmatpush1.msra.mxu0 0.0
        %1135 = vmatprep.subr.mxu0 0.0
        %1136 = vmatpush1.msra.mxu0 0.0
        %1137 = vmatprep.subr.mxu0 0.0
        %1138 = vmatpush1.msra.mxu0 0.0
        %1139 = vmatprep.subr.mxu0 0.0
        %1140 = vmatpush1.msra.mxu0 0.0
        %1141 = vmatprep.subr.mxu0 0.0
        %1142 = vmatpush1.msra.mxu0 0.0
        %1143 = vmatprep.subr.mxu0 0.0
        %1144 = vmatpush1.msra.mxu0 0.0
        %1145 = vmatprep.subr.mxu0 0.0
        %1146 = vmatpush1.msra.mxu0 0.0
        %1147 = vmatprep.subr.mxu0 0.0
        %1148 = vmatpush1.msra.mxu0 0.0
        %1149 = vmatprep.subr.mxu0 0.0
        %1150 = vmatpush1.msra.mxu0 0.0
        %1151 = vmatprep.subr.mxu0 0.0
        %1152 = vmatpush1.msra.mxu0 0.0
        %1153 = vmatprep.subr.mxu0 0.0
        %1154 = vmatpush1.msra.mxu0 0.0
        %1155 = vmatprep.subr.mxu0 0.0
        %1156 = vmatpush1.msra.mxu0 0.0
        %1157 = vmatprep.subr.mxu0 0.0
        %1158 = vmatpush1.msra.mxu0 0.0
        %1159 = vmatprep.subr.mxu0 0.0
        %1160 = vmatpush1.msra.mxu0 0.0
        %1161 = vmatprep.subr.mxu0 0.0
        %1162 = vmatpush1.msra.mxu0 0.0
        %1163 = vmatprep.subr.mxu0 0.0
        %1164 = vmatpush1.msra.mxu0 0.0
        %1165 = vmatprep.subr.mxu0 0.0
        %1166 = vmatpush1.msra.mxu0 0.0
        %1167 = vmatprep.subr.mxu0 0.0
        %1168 = vmatpush1.msra.mxu0 0.0
        %1169 = vmatprep.subr.mxu0 0.0
        %1170 = vmatpush1.msra.mxu0 0.0
        %1171 = vmatprep.subr.mxu0 0.0
        %1172 = vmatpush1.msra.mxu0 0.0
        %1173 = vmatprep.subr.mxu0 0.0
        %1174 = vmatpush1.msra.mxu0 0.0
        %1175 = vmatprep.subr.mxu0 0.0
        %1176 = vmatpush1.msra.mxu0 0.0
        %1177 = vmatprep.subr.mxu0 0.0
        %1178 = vmatpush1.msra.mxu0 0.0
        %1179 = vmatprep.subr.mxu0 0.0
        %1180 = vmatpush1.msra.mxu0 0.0
        %1181 = vmatprep.mubr.f32.mxu0 0.0
        %1182 = vmatmul.mubr.f32.gmra.mrb[0].mxu0 %v1115
        %v1183 = vpop.f32.mrb[0].mxu0
        %v1184 = vadd.f32 0.0, %v1183
        %v1185 = vpop.f32.mrb[0].mxu0
        %1186 = vdwg.mxu0
        %v1187 = vadd.f32 %v1113, %v1184
        %v1189 = vsel %vm398, %v963, 0
        %1191 = vmatprep.subr.mxu0 0.0
        %1192 = vmatpush1.msra.mxu0 %v396
        %1193 = vmatprep.subr.mxu0 0.0
        %1194 = vmatpush1.msra.mxu0 0.0
        %1195 = vmatprep.subr.mxu0 0.0
        %1196 = vmatpush1.msra.mxu0 0.0
        %1197 = vmatprep.subr.mxu0 0.0
        %1198 = vmatpush1.msra.mxu0 0.0
        %1199 = vmatprep.subr.mxu0 0.0
        %1200 = vmatpush1.msra.mxu0 0.0
        %1201 = vmatprep.subr.mxu0 0.0
        %1202 = vmatpush1.msra.mxu0 0.0
        %1203 = vmatprep.subr.mxu0 0.0
        %1204 = vmatpush1.msra.mxu0 0.0
        %1205 = vmatprep.subr.mxu0 0.0
        %1206 = vmatpush1.msra.mxu0 0.0
        %1207 = vmatprep.subr.mxu0 0.0
        %1208 = vmatpush1.msra.mxu0 0.0
        %1209 = vmatprep.subr.mxu0 0.0
        %1210 = vmatpush1.msra.mxu0 0.0
        %1211 = vmatprep.subr.mxu0 0.0
        %1212 = vmatpush1.msra.mxu0 0.0
        %1213 = vmatprep.subr.mxu0 0.0
        %1214 = vmatpush1.msra.mxu0 0.0
        %1215 = vmatprep.subr.mxu0 0.0
        %1216 = vmatpush1.msra.mxu0 0.0
        %1217 = vmatprep.subr.mxu0 0.0
        %1218 = vmatpush1.msra.mxu0 0.0
        %1219 = vmatprep.subr.mxu0 0.0
        %1220 = vmatpush1.msra.mxu0 0.0
        %1221 = vmatprep.subr.mxu0 0.0
        %1222 = vmatpush1.msra.mxu0 0.0
        %1223 = vmatprep.subr.mxu0 0.0
        %1224 = vmatpush1.msra.mxu0 0.0
        %1225 = vmatprep.subr.mxu0 0.0
        %1226 = vmatpush1.msra.mxu0 0.0
        %1227 = vmatprep.subr.mxu0 0.0
        %1228 = vmatpush1.msra.mxu0 0.0
        %1229 = vmatprep.subr.mxu0 0.0
        %1230 = vmatpush1.msra.mxu0 0.0
        %1231 = vmatprep.subr.mxu0 0.0
        %1232 = vmatpush1.msra.mxu0 0.0
        %1233 = vmatprep.subr.mxu0 0.0
        %1234 = vmatpush1.msra.mxu0 0.0
        %1235 = vmatprep.subr.mxu0 0.0
        %1236 = vmatpush1.msra.mxu0 0.0
        %1237 = vmatprep.subr.mxu0 0.0
        %1238 = vmatpush1.msra.mxu0 0.0
        %1239 = vmatprep.subr.mxu0 0.0
        %1240 = vmatpush1.msra.mxu0 0.0
        %1241 = vmatprep.subr.mxu0 0.0
        %1242 = vmatpush1.msra.mxu0 0.0
        %1243 = vmatprep.subr.mxu0 0.0
        %1244 = vmatpush1.msra.mxu0 0.0
        %1245 = vmatprep.subr.mxu0 0.0
        %1246 = vmatpush1.msra.mxu0 0.0
        %1247 = vmatprep.subr.mxu0 0.0
        %1248 = vmatpush1.msra.mxu0 0.0
        %1249 = vmatprep.subr.mxu0 0.0
        %1250 = vmatpush1.msra.mxu0 0.0
        %1251 = vmatprep.subr.mxu0 0.0
        %1252 = vmatpush1.msra.mxu0 0.0
        %1253 = vmatprep.subr.mxu0 0.0
        %1254 = vmatpush1.msra.mxu0 0.0
        %1255 = vmatprep.mubr.f32.mxu0 0.0
        %1256 = vmatmul.mubr.f32.gmra.mrb[0].mxu0 %v1189
        %v1257 = vpop.f32.mrb[0].mxu0
        %v1258 = vadd.f32 0.0, %v1257
        %v1259 = vpop.f32.mrb[0].mxu0
        %1260 = vdwg.mxu0
        %v1261 = vadd.f32 %v1187, %v1258
        %v1263 = vsel %vm398, %v1036, 0
        %1265 = vmatprep.subr.mxu0 0.0
        %1266 = vmatpush1.msra.mxu0 %v397
        %1267 = vmatprep.subr.mxu0 0.0
        %1268 = vmatpush1.msra.mxu0 0.0
        %1269 = vmatprep.subr.mxu0 0.0
        %1270 = vmatpush1.msra.mxu0 0.0
        %1271 = vmatprep.subr.mxu0 0.0
        %1272 = vmatpush1.msra.mxu0 0.0
        %1273 = vmatprep.subr.mxu0 0.0
        %1274 = vmatpush1.msra.mxu0 0.0
        %1275 = vmatprep.subr.mxu0 0.0
        %1276 = vmatpush1.msra.mxu0 0.0
        %1277 = vmatprep.subr.mxu0 0.0
        %1278 = vmatpush1.msra.mxu0 0.0
        %1279 = vmatprep.subr.mxu0 0.0
        %1280 = vmatpush1.msra.mxu0 0.0
        %1281 = vmatprep.subr.mxu0 0.0
        %1282 = vmatpush1.msra.mxu0 0.0
        %1283 = vmatprep.subr.mxu0 0.0
        %1284 = vmatpush1.msra.mxu0 0.0
        %1285 = vmatprep.subr.mxu0 0.0
        %1286 = vmatpush1.msra.mxu0 0.0
        %1287 = vmatprep.subr.mxu0 0.0
        %1288 = vmatpush1.msra.mxu0 0.0
        %1289 = vmatprep.subr.mxu0 0.0
        %1290 = vmatpush1.msra.mxu0 0.0
        %1291 = vmatprep.subr.mxu0 0.0
        %1292 = vmatpush1.msra.mxu0 0.0
        %1293 = vmatprep.subr.mxu0 0.0
        %1294 = vmatpush1.msra.mxu0 0.0
        %1295 = vmatprep.subr.mxu0 0.0
        %1296 = vmatpush1.msra.mxu0 0.0
        %1297 = vmatprep.subr.mxu0 0.0
        %1298 = vmatpush1.msra.mxu0 0.0
        %1299 = vmatprep.subr.mxu0 0.0
        %1300 = vmatpush1.msra.mxu0 0.0
        %1301 = vmatprep.subr.mxu0 0.0
        %1302 = vmatpush1.msra.mxu0 0.0
        %1303 = vmatprep.subr.mxu0 0.0
        %1304 = vmatpush1.msra.mxu0 0.0
        %1305 = vmatprep.subr.mxu0 0.0
        %1306 = vmatpush1.msra.mxu0 0.0
        %1307 = vmatprep.subr.mxu0 0.0
        %1308 = vmatpush1.msra.mxu0 0.0
        %1309 = vmatprep.subr.mxu0 0.0
        %1310 = vmatpush1.msra.mxu0 0.0
        %1311 = vmatprep.subr.mxu0 0.0
        %1312 = vmatpush1.msra.mxu0 0.0
        %1313 = vmatprep.subr.mxu0 0.0
        %1314 = vmatpush1.msra.mxu0 0.0
        %1315 = vmatprep.subr.mxu0 0.0
        %1316 = vmatpush1.msra.mxu0 0.0
        %1317 = vmatprep.subr.mxu0 0.0
        %1318 = vmatpush1.msra.mxu0 0.0
        %1319 = vmatprep.subr.mxu0 0.0
        %1320 = vmatpush1.msra.mxu0 0.0
        %1321 = vmatprep.subr.mxu0 0.0
        %1322 = vmatpush1.msra.mxu0 0.0
        %1323 = vmatprep.subr.mxu0 0.0
        %1324 = vmatpush1.msra.mxu0 0.0
        %1325 = vmatprep.subr.mxu0 0.0
        %1326 = vmatpush1.msra.mxu0 0.0
        %1327 = vmatprep.subr.mxu0 0.0
        %1328 = vmatpush1.msra.mxu0 0.0
        %1329 = vmatprep.mubr.f32.mxu0 0.0
        %1330 = vmatmul.mubr.f32.gmra.mrb[0].mxu0 %v1263
        %v1331 = vpop.f32.mrb[0].mxu0
        %v1332 = vadd.f32 0.0, %v1331
        %v1333 = vpop.f32.mrb[0].mxu0
        %1334 = vdwg.mxu0
        %v1335 = vadd.f32 %v1261, %v1332
        %vm1336 = vcmask 261120
        %1337 = vst.msk [vmem:[#allocation2] sm:$0xff] %vm1336, %v1335
        // Predicated region
        $region61: #{tpu_custom_call.1} parent=39 // pred_check
          %p1338 = pneg %p374
        $region62: #{tpu_custom_call.1} parent=39 // pred_check_branch
          %1340 = sbr.rel (%p1338) target = $region64
        $region63: #{tpu_custom_call.1} parent=39 // pred_region
          %v1341 = vld [vmem:[#allocation2] sm:$0xff]
          %v1342 = vld [vmem:[%s4] sm:$0x1]
          %v1344 = vlaneseq
          %v1345 = vshrl.u32 %v1344, 7
          %v1346 = vsub.s32 0, %v1345
          %v1347 = vrot.slane %v1342, %v1346
          %v1349 = vadd.f32 %v1341, %v1347
          %1350 = vst.msk [vmem:[%s370] sm:$0xff] %vm1336, %v1349
        $region64: #{tpu_custom_call.1} parent=39 // pred_fallthru
          _
        %s1351 = sand.u32 %s183, 1
        %s1352 = scalar_lea.sflag [#allocation5], %s1351
        %s1353 = sand.u32 %s183, 1
        %s1354 = smul.addr %s1353, 8
        %s1355 = scalar_lea.vmem [#allocation11], %s1354
        // Predicated region
        $region65: #{tpu_custom_call.1} parent=39 // pred_check
          %p1356 = pneg %p193
        $region66: #{tpu_custom_call.1} parent=39 // pred_check_branch
          %1358 = sbr.rel (%p1356) target = $region68
        $region67: #{tpu_custom_call.1} parent=39 // pred_region
          %s1360 = ssub.s32 128, 128
          %1361 = vsyncadd %s1352, %s1360
          %s1362 = sadd.s32 %s32, %s31
          %s1363 = smul.addr %s1362, 128
          %s1364 = scalar_lea.hbm %s5, %s1363
          %s1366 = sshll.u32 %s1355, 4
          %s1367 = int_to_ptr.vmem [resolvable:$true] %s1366
          %1369 = dma.vmem_to_hbm [thread:$0]  %s1367, 128, %s1364, %s1352
        $region68: #{tpu_custom_call.1} parent=39 // pred_fallthru
          _
      $region40: #{tpu_custom_call.1} parent=5 // pred_fallthru
        _
      %p1370 = scmp.le.s32.totalorder 2, %s21
      // Predicated region
      $region69: #{tpu_custom_call.1} parent=5 // pred_check
        %p1371 = pneg %p1370
      $region70: #{tpu_custom_call.1} parent=5 // pred_check_branch
        %1373 = sbr.rel (%p1371) target = $region72
      $region71: #{tpu_custom_call.1} parent=5 // pred_region
        %s1374 = ssub.s32 %s21, 2
        // Predicated region
        $region73: #{tpu_custom_call.1} parent=71 // pred_check
          %p1375 = pneg %p199
        $region74: #{tpu_custom_call.1} parent=71 // pred_check_branch
          %1377 = sbr.rel (%p1375) target = $region76
        $region75: #{tpu_custom_call.1} parent=71 // pred_region
          %s1378 = sand.u32 %s184, 1
          %s1379 = scalar_lea.sflag [#allocation5], %s1378
          %s1380 = sand.u32 %s184, 1
          %s1381 = smul.addr %s1380, 8
          %s1382 = scalar_lea.vmem [#allocation11], %s1381
          %1383 = dma.done %s1379, 128
        $region76: #{tpu_custom_call.1} parent=71 // pred_fallthru
          _
      $region72: #{tpu_custom_call.1} parent=5 // pred_fallthru
        _
    $region6: #{tpu_custom_call.1} parent=1 // loop_footer
      %s25 = sadd.s32 1, %s21
    $region7: #{tpu_custom_call.1} parent=1 // loop_footer_branch
      %20 = sbr.rel target = $region3
    $region8: #{tpu_custom_call.1} parent=1 // loop_exit
      _
    %1384 = vsyncpa [#allocation4], 1
    %s1385 = scalar_lea.sflag [#allocation4], 1
    %1386 = vsyncpa %s1385, 1
    %1387 = vsyncpa [#allocation7], 1
    %s1388 = scalar_lea.sflag [#allocation7], 1
    %1389 = vsyncpa %s1388, 1
    %1390 = vsyncpa [#allocation10], 1
    %1391 = vsyncpa [#allocation5], 1
    %s1392 = scalar_lea.sflag [#allocation5], 1
    %1393 = vsyncpa %s1392, 1

</llo_original>
